<compile_context>
chip_gen: v5e
topology: v5e:2x2
jax: 0.10.0
libtpu: 0.0.40
codegen_flags: <defaults>
</compile_context>

<pallas_src>
import jax
import jax.numpy as jnp
from jax.experimental import pallas as pl
from jax.experimental.pallas import tpu as pltpu

EPS = 1e-5
N_BLOCKS = 5


# ----------------------------------- Pallas kernel ---------------------------------------


def decoder_cbn_kernel(u_ref, w_in_ref, w_res_ref, b_misc_ref, out_ref):
    """u:(D+Z+C+1, N)  w_in:(23H, D+Z+C+1)  w_res:(2*NB, H, H)  b_misc:(H, 2*NB+2)  out:(1, N)."""
    H = w_res_ref.shape[-1]
    n_blocks = w_res_ref.shape[0] // 2
    N = u_ref.shape[-1]
    inv_n = 1.0 / N

    b_misc = b_misc_ref[...]                                        # (H, 2*NB+2)

    # One fused matmul: fc_p + fc_z + all gamma/beta projections (+ biases via the ones-row).
    slab = jnp.dot(w_in_ref[...], u_ref[...],
                   preferred_element_type=jnp.float32)              # (23H, N)

    def cbn_relu(x, j):
        """Conditional batch-norm (training stats) folded into an affine, then ReLU."""
        base = (1 + 2 * j) * H
        gamma = slab[base:base + H, :]                              # (H, N)
        beta = slab[base + H:base + 2 * H, :]                       # (H, N)
        # single-pass per-channel statistics over all B*T positions (lanes)
        mean = jnp.sum(x, axis=1, keepdims=True) * inv_n            # (H, 1)
        ex2 = jnp.sum(x * x, axis=1, keepdims=True) * inv_n         # (H, 1)
        var = ex2 - mean * mean
        scale = gamma * jax.lax.rsqrt(var + EPS)                    # (H, N)
        shift = beta - mean * scale                                 # (H, N)
        return jnp.maximum(x * scale + shift, 0.0)

    net = slab[0:H, :]                                              # fc_p(p) + fc_z(z) + biases
    for i in range(n_blocks):                                       # 5 CResnetBlockConv1d blocks
        h = cbn_relu(net, 2 * i)
        h = jnp.dot(w_res_ref[2 * i], h,
                    preferred_element_type=jnp.float32) + b_misc[:, 2 * i:2 * i + 1]
        h = cbn_relu(h, 2 * i + 1)
        dx = jnp.dot(w_res_ref[2 * i + 1], h,
                     preferred_element_type=jnp.float32) + b_misc[:, 2 * i + 1:2 * i + 2]
        net = net + dx                                              # identity shortcut (H == H)

    # final CBN -> ReLU -> fc_out as elementwise mul + sublane reduction (lane-dense output)
    h = cbn_relu(net, 2 * n_blocks)
    w_out = b_misc[:, 2 * n_blocks:2 * n_blocks + 1]                # (H, 1)
    b_out = b_misc[0:1, 2 * n_blocks + 1:2 * n_blocks + 2]          # (1, 1)
    out_ref[...] = jnp.sum(h * w_out, axis=0, keepdims=True) + b_out


# ------------------------------- host-side parameter packing -----------------------------


def pack_params(params, D, Z, C, H):
    """Pack the 24 raw parameter tensors into 3 kernel operands (done once, host-side)."""
    f32 = jnp.float32

    def affine_block(w_p=None, w_z=None, w_c=None, bias=None):
        # one (H, D+Z+C+1) row-block of the fused input/affine projection matrix
        cols = [
            w_p if w_p is not None else jnp.zeros((H, D), f32),
            w_z if w_z is not None else jnp.zeros((H, Z), f32),
            w_c if w_c is not None else jnp.zeros((H, C), f32),
            bias.reshape(H, 1).astype(f32),
        ]
        return jnp.concatenate(cols, axis=1)

    blocks = [affine_block(w_p=params["wp"].T, w_z=params["wz"].T,
                           bias=params["bp"] + params["bz"])]          # initial `net`
    for i in range(N_BLOCKS):
        for (wg, bg, wb, bb) in (("g0w", "g0b", "be0w", "be0b"),
                                 ("g1w", "g1b", "be1w", "be1b")):
            blocks.append(affine_block(w_c=params[wg][i].T, bias=params[bg][i]))   # gamma
            blocks.append(affine_block(w_c=params[wb][i].T, bias=params[bb][i]))   # beta
    blocks.append(affine_block(w_c=params["gw"].T, bias=params["gb"]))             # final gamma
    blocks.append(affine_block(w_c=params["bew"].T, bias=params["beb"]))           # final beta
    w_in = jnp.concatenate(blocks, axis=0)                              # (23H, D+Z+C+1)

    # residual fc weights, channels-first orientation (out, in), interleaved [fc_0, fc_1]*NB
    w_res = jnp.stack(
        [params[name][i].T for i in range(N_BLOCKS) for name in ("f0w", "f1w")],
        axis=0)                                                         # (2*NB, H, H)

    # per-channel bias slab: fc_0/fc_1 biases, then w_out column, then b_out scalar in row 0
    b_cols = [params[name][i].reshape(H, 1)
              for i in range(N_BLOCKS) for name in ("f0b", "f1b")]
    b_cols.append(params["wout"].reshape(H, 1))
    b_cols.append(jnp.zeros((H, 1), f32).at[0, 0].set(params["bout"].reshape(())))
    b_misc = jnp.concatenate(b_cols, axis=1)                            # (H, 2*NB + 2)

    return {"w_in": w_in, "w_res": w_res, "b_misc": b_misc}


# --------------------------------------- wrapper -----------------------------------------


@jax.jit
def decoder_cbatchnorm(p, z, c, packed):
    """p: (B, T, D), z: (B, Z), c: tuple whose first element is (B, C).  Returns (B, 1, T)."""
    c0 = c[0]                                   # mirrors `c = c[0]` in the torch forward
    B, T, D = p.shape
    N = B * T

    # channels-first data slab U: rows = [p-dims | z-dims | c-dims | 1], columns = B*T points
    p_cf = jnp.transpose(p, (2, 0, 1)).reshape(D, N)                    # (D, N)
    zc_cf = jnp.repeat(jnp.concatenate([z, c0], axis=1), T, axis=0).T   # (Z+C, N)
    u = jnp.concatenate([p_cf, zc_cf, jnp.ones((1, N), jnp.float32)], axis=0)

    vmem = pl.BlockSpec(memory_space=pltpu.MemorySpace.VMEM)
    out = pl.pallas_call(
        decoder_cbn_kernel,
        out_shape=jax.ShapeDtypeStruct((1, N), jnp.float32),
        in_specs=[vmem, vmem, vmem, vmem],
        out_specs=vmem,
    )(u, packed["w_in"], packed["w_res"], packed["b_misc"])

    # back to PyTorch NCW convention: (B, 1, T)
    return out.reshape(B, T)[:, None, :]


# ----------------------------------- pure-JAX reference ----------------------------------


def decoder_cbatchnorm_ref(p, z, c, params):
    c0 = c[0]

    def mm(x, w):
        return jnp.einsum("...k,kn->...n", x, w)

    def bn(x):
        m = jnp.mean(x, axis=(0, 1), keepdims=True)
        v = jnp.mean((x - m) ** 2, axis=(0, 1), keepdims=True)
        return (x - m) / jnp.sqrt(v + EPS)

    def cbn(x, gw, gb, bw, bb):
        g = mm(c0, gw) + gb
        b = mm(c0, bw) + bb
        return g[:, None, :] * bn(x) + b[:, None, :]

    net = mm(p, params["wp"]) + params["bp"]
    net = net + (mm(z, params["wz"]) + params["bz"])[:, None, :]
    for i in range(N_BLOCKS):
        h = jnp.maximum(cbn(net, params["g0w"][i], params["g0b"][i],
                            params["be0w"][i], params["be0b"][i]), 0.0)
        h = mm(h, params["f0w"][i]) + params["f0b"][i]
        h = jnp.maximum(cbn(h, params["g1w"][i], params["g1b"][i],
                            params["be1w"][i], params["be1b"][i]), 0.0)
        net = net + mm(h, params["f1w"][i]) + params["f1b"][i]
    h = jnp.maximum(cbn(net, params["gw"], params["gb"], params["bew"], params["beb"]), 0.0)
    out = mm(h, params["wout"]) + params["bout"]
    return jnp.transpose(out, (0, 2, 1))


# ---------------------------------------- main -------------------------------------------


def make_params(key, D, Z, C, H):
    ks = iter(jax.random.split(key, 64))

    def w(shape, fan_in):
        return (jax.random.normal(next(ks), shape, jnp.float32) / jnp.sqrt(float(fan_in)))

    def b(shape):
        return 0.1 * jax.random.normal(next(ks), shape, jnp.float32)

    params = dict(
        wp=w((D, H), D), bp=b((1, H)),
        wz=w((Z, H), Z), bz=b((1, H)),
        # per-resnet-block stacked params, leading axis = block index
        g0w=w((N_BLOCKS, C, H), C), g0b=b((N_BLOCKS, 1, H)),
        be0w=w((N_BLOCKS, C, H), C), be0b=b((N_BLOCKS, 1, H)),
        g1w=w((N_BLOCKS, C, H), C), g1b=b((N_BLOCKS, 1, H)),
        be1w=w((N_BLOCKS, C, H), C), be1b=b((N_BLOCKS, 1, H)),
        f0w=w((N_BLOCKS, H, H), H), f0b=b((N_BLOCKS, 1, H)),
        f1w=w((N_BLOCKS, H, H), H), f1b=b((N_BLOCKS, 1, H)),
        # final CBatchNorm1d + fc_out
        gw=w((C, H), C), gb=b((1, H)),
        bew=w((C, H), C), beb=b((1, H)),
        wout=w((H, 1), H), bout=b((1, 1)),
    )
    return params


if __name__ == "__main__":
    B, T, D, Z, C, H = 2, 64, 3, 16, 16, 32

    key = jax.random.PRNGKey(0)
    kp, kz, kc, kw = jax.random.split(key, 4)
    p = jax.random.normal(kp, (B, T, D), jnp.float32)
    z = jax.random.normal(kz, (B, Z), jnp.float32)
    c_tensor = jax.random.normal(kc, (B, C), jnp.float32)
    c = (c_tensor,)                      # forward does `c = c[0]`

    params = make_params(kw, D, Z, C, H)
    packed = pack_params(params, D=D, Z=Z, C=C, H=H)

    out = decoder_cbatchnorm(p, z, c, packed)
    out = jax.block_until_ready(out)

    ref = jax.block_until_ready(decoder_cbatchnorm_ref(p, z, c, params))

    assert out.shape == (B, 1, T), out.shape
    assert bool(jnp.all(jnp.isfinite(out)))
    assert bool(jnp.allclose(out, ref, atol=2e-2, rtol=2e-2)), float(jnp.max(jnp.abs(out - ref)))

    print("KERNEL_OK")
</pallas_src>

<mosaic_0001>
module attributes {stable_mosaic.version = 11 : i64} {
  func.func @decoder_cbn_kernel(%arg0: memref<36x128xf32, #tpu.memory_space<vmem>>, %arg1: memref<736x36xf32, #tpu.memory_space<vmem>>, %arg2: memref<10x32x32xf32, #tpu.memory_space<vmem>>, %arg3: memref<32x12xf32, #tpu.memory_space<vmem>>, %arg4: memref<1x128xf32, #tpu.memory_space<vmem>>) attributes {dimension_semantics = [], scalar_prefetch = 0 : i64, scratch_operands = 0 : i64, tpu.core_type = #tpu.core_type<tc>} {
    %c0 = arith.constant 0 : index
    %c0_0 = arith.constant 0 : index
    %0 = vector.load %arg3[%c0, %c0_0] : memref<32x12xf32, #tpu.memory_space<vmem>>, vector<32x12xf32>
    %c0_1 = arith.constant 0 : index
    %c0_2 = arith.constant 0 : index
    %1 = vector.load %arg1[%c0_1, %c0_2] : memref<736x36xf32, #tpu.memory_space<vmem>>, vector<736x36xf32>
    %c0_3 = arith.constant 0 : index
    %c0_4 = arith.constant 0 : index
    %2 = vector.load %arg0[%c0_3, %c0_4] : memref<36x128xf32, #tpu.memory_space<vmem>>, vector<36x128xf32>
    %cst = arith.constant dense<0.000000e+00> : vector<736x128xf32>
    %3 = tpu.matmul %1, %2, %cst {dimension_numbers = #tpu.dot_dimension_numbers<[1], [0], [0], [1], [0, 0, 1, 1], [], []>} : vector<736x36xf32>, vector<36x128xf32>, vector<736x128xf32> -> vector<736x128xf32>
    %4 = vector.extract_strided_slice %3 {offsets = [0, 0], sizes = [32, 128], strides = [1, 1]} : vector<736x128xf32> to vector<32x128xf32>
    %5 = vector.extract_strided_slice %3 {offsets = [32, 0], sizes = [32, 128], strides = [1, 1]} : vector<736x128xf32> to vector<32x128xf32>
    %6 = vector.extract_strided_slice %3 {offsets = [64, 0], sizes = [32, 128], strides = [1, 1]} : vector<736x128xf32> to vector<32x128xf32>
    %cst_5 = arith.constant dense<0.000000e+00> : vector<32xf32>
    %7 = vector.multi_reduction <add>, %4, %cst_5 [1] : vector<32x128xf32> to vector<32xf32>
    %8 = vector.shape_cast %7 : vector<32xf32> to vector<32x1xf32>
    %cst_6 = arith.constant 7.812500e-03 : f32
    %9 = vector.broadcast %cst_6 : f32 to vector<32x1xf32>
    %10 = arith.mulf %8, %9 : vector<32x1xf32>
    %11 = arith.mulf %4, %4 : vector<32x128xf32>
    %cst_7 = arith.constant dense<0.000000e+00> : vector<32xf32>
    %12 = vector.multi_reduction <add>, %11, %cst_7 [1] : vector<32x128xf32> to vector<32xf32>
    %13 = vector.shape_cast %12 : vector<32xf32> to vector<32x1xf32>
    %cst_8 = arith.constant 7.812500e-03 : f32
    %14 = vector.broadcast %cst_8 : f32 to vector<32x1xf32>
    %15 = arith.mulf %13, %14 : vector<32x1xf32>
    %16 = arith.mulf %10, %10 : vector<32x1xf32>
    %17 = arith.subf %15, %16 : vector<32x1xf32>
    %cst_9 = arith.constant 9.99999974E-6 : f32
    %18 = vector.broadcast %cst_9 : f32 to vector<32x1xf32>
    %19 = arith.addf %17, %18 : vector<32x1xf32>
    %20 = math.rsqrt %19 : vector<32x1xf32>
    %21 = vector.broadcast %20 : vector<32x1xf32> to vector<32x128xf32>
    %22 = arith.mulf %5, %21 : vector<32x128xf32>
    %23 = vector.broadcast %10 : vector<32x1xf32> to vector<32x128xf32>
    %24 = arith.mulf %23, %22 : vector<32x128xf32>
    %25 = arith.subf %6, %24 : vector<32x128xf32>
    %26 = arith.mulf %4, %22 : vector<32x128xf32>
    %27 = arith.addf %26, %25 : vector<32x128xf32>
    %cst_10 = arith.constant 0.000000e+00 : f32
    %28 = vector.broadcast %cst_10 : f32 to vector<32x128xf32>
    %29 = arith.maximumf %27, %28 : vector<32x128xf32>
    %c0_11 = arith.constant 0 : index
    %c0_12 = arith.constant 0 : index
    %c0_13 = arith.constant 0 : index
    %30 = vector.load %arg2[%c0_11, %c0_12, %c0_13] : memref<10x32x32xf32, #tpu.memory_space<vmem>>, vector<1x32x32xf32>
    %31 = vector.shape_cast %30 : vector<1x32x32xf32> to vector<32x32xf32>
    %cst_14 = arith.constant dense<0.000000e+00> : vector<32x128xf32>
    %32 = tpu.matmul %31, %29, %cst_14 {dimension_numbers = #tpu.dot_dimension_numbers<[1], [0], [0], [1], [0, 0, 1, 1], [], []>} : vector<32x32xf32>, vector<32x128xf32>, vector<32x128xf32> -> vector<32x128xf32>
    %33 = vector.extract_strided_slice %0 {offsets = [0, 0], sizes = [32, 1], strides = [1, 1]} : vector<32x12xf32> to vector<32x1xf32>
    %34 = vector.broadcast %33 : vector<32x1xf32> to vector<32x128xf32>
    %35 = arith.addf %32, %34 : vector<32x128xf32>
    %36 = vector.extract_strided_slice %3 {offsets = [96, 0], sizes = [32, 128], strides = [1, 1]} : vector<736x128xf32> to vector<32x128xf32>
    %37 = vector.extract_strided_slice %3 {offsets = [128, 0], sizes = [32, 128], strides = [1, 1]} : vector<736x128xf32> to vector<32x128xf32>
    %cst_15 = arith.constant dense<0.000000e+00> : vector<32xf32>
    %38 = vector.multi_reduction <add>, %35, %cst_15 [1] : vector<32x128xf32> to vector<32xf32>
    %39 = vector.shape_cast %38 : vector<32xf32> to vector<32x1xf32>
    %cst_16 = arith.constant 7.812500e-03 : f32
    %40 = vector.broadcast %cst_16 : f32 to vector<32x1xf32>
    %41 = arith.mulf %39, %40 : vector<32x1xf32>
    %42 = arith.mulf %35, %35 : vector<32x128xf32>
    %cst_17 = arith.constant dense<0.000000e+00> : vector<32xf32>
    %43 = vector.multi_reduction <add>, %42, %cst_17 [1] : vector<32x128xf32> to vector<32xf32>
    %44 = vector.shape_cast %43 : vector<32xf32> to vector<32x1xf32>
    %cst_18 = arith.constant 7.812500e-03 : f32
    %45 = vector.broadcast %cst_18 : f32 to vector<32x1xf32>
    %46 = arith.mulf %44, %45 : vector<32x1xf32>
    %47 = arith.mulf %41, %41 : vector<32x1xf32>
    %48 = arith.subf %46, %47 : vector<32x1xf32>
    %cst_19 = arith.constant 9.99999974E-6 : f32
    %49 = vector.broadcast %cst_19 : f32 to vector<32x1xf32>
    %50 = arith.addf %48, %49 : vector<32x1xf32>
    %51 = math.rsqrt %50 : vector<32x1xf32>
    %52 = vector.broadcast %51 : vector<32x1xf32> to vector<32x128xf32>
    %53 = arith.mulf %36, %52 : vector<32x128xf32>
    %54 = vector.broadcast %41 : vector<32x1xf32> to vector<32x128xf32>
    %55 = arith.mulf %54, %53 : vector<32x128xf32>
    %56 = arith.subf %37, %55 : vector<32x128xf32>
    %57 = arith.mulf %35, %53 : vector<32x128xf32>
    %58 = arith.addf %57, %56 : vector<32x128xf32>
    %cst_20 = arith.constant 0.000000e+00 : f32
    %59 = vector.broadcast %cst_20 : f32 to vector<32x128xf32>
    %60 = arith.maximumf %58, %59 : vector<32x128xf32>
    %c1 = arith.constant 1 : index
    %c0_21 = arith.constant 0 : index
    %c0_22 = arith.constant 0 : index
    %61 = vector.load %arg2[%c1, %c0_21, %c0_22] : memref<10x32x32xf32, #tpu.memory_space<vmem>>, vector<1x32x32xf32>
    %62 = vector.shape_cast %61 : vector<1x32x32xf32> to vector<32x32xf32>
    %cst_23 = arith.constant dense<0.000000e+00> : vector<32x128xf32>
    %63 = tpu.matmul %62, %60, %cst_23 {dimension_numbers = #tpu.dot_dimension_numbers<[1], [0], [0], [1], [0, 0, 1, 1], [], []>} : vector<32x32xf32>, vector<32x128xf32>, vector<32x128xf32> -> vector<32x128xf32>
    %64 = vector.extract_strided_slice %0 {offsets = [0, 1], sizes = [32, 1], strides = [1, 1]} : vector<32x12xf32> to vector<32x1xf32>
    %65 = vector.broadcast %64 : vector<32x1xf32> to vector<32x128xf32>
    %66 = arith.addf %63, %65 : vector<32x128xf32>
    %67 = arith.addf %4, %66 : vector<32x128xf32>
    %68 = vector.extract_strided_slice %3 {offsets = [160, 0], sizes = [32, 128], strides = [1, 1]} : vector<736x128xf32> to vector<32x128xf32>
    %69 = vector.extract_strided_slice %3 {offsets = [192, 0], sizes = [32, 128], strides = [1, 1]} : vector<736x128xf32> to vector<32x128xf32>
    %cst_24 = arith.constant dense<0.000000e+00> : vector<32xf32>
    %70 = vector.multi_reduction <add>, %67, %cst_24 [1] : vector<32x128xf32> to vector<32xf32>
    %71 = vector.shape_cast %70 : vector<32xf32> to vector<32x1xf32>
    %cst_25 = arith.constant 7.812500e-03 : f32
    %72 = vector.broadcast %cst_25 : f32 to vector<32x1xf32>
    %73 = arith.mulf %71, %72 : vector<32x1xf32>
    %74 = arith.mulf %67, %67 : vector<32x128xf32>
    %cst_26 = arith.constant dense<0.000000e+00> : vector<32xf32>
    %75 = vector.multi_reduction <add>, %74, %cst_26 [1] : vector<32x128xf32> to vector<32xf32>
    %76 = vector.shape_cast %75 : vector<32xf32> to vector<32x1xf32>
    %cst_27 = arith.constant 7.812500e-03 : f32
    %77 = vector.broadcast %cst_27 : f32 to vector<32x1xf32>
    %78 = arith.mulf %76, %77 : vector<32x1xf32>
    %79 = arith.mulf %73, %73 : vector<32x1xf32>
    %80 = arith.subf %78, %79 : vector<32x1xf32>
    %cst_28 = arith.constant 9.99999974E-6 : f32
    %81 = vector.broadcast %cst_28 : f32 to vector<32x1xf32>
    %82 = arith.addf %80, %81 : vector<32x1xf32>
    %83 = math.rsqrt %82 : vector<32x1xf32>
    %84 = vector.broadcast %83 : vector<32x1xf32> to vector<32x128xf32>
    %85 = arith.mulf %68, %84 : vector<32x128xf32>
    %86 = vector.broadcast %73 : vector<32x1xf32> to vector<32x128xf32>
    %87 = arith.mulf %86, %85 : vector<32x128xf32>
    %88 = arith.subf %69, %87 : vector<32x128xf32>
    %89 = arith.mulf %67, %85 : vector<32x128xf32>
    %90 = arith.addf %89, %88 : vector<32x128xf32>
    %cst_29 = arith.constant 0.000000e+00 : f32
    %91 = vector.broadcast %cst_29 : f32 to vector<32x128xf32>
    %92 = arith.maximumf %90, %91 : vector<32x128xf32>
    %c2 = arith.constant 2 : index
    %c0_30 = arith.constant 0 : index
    %c0_31 = arith.constant 0 : index
    %93 = vector.load %arg2[%c2, %c0_30, %c0_31] : memref<10x32x32xf32, #tpu.memory_space<vmem>>, vector<1x32x32xf32>
    %94 = vector.shape_cast %93 : vector<1x32x32xf32> to vector<32x32xf32>
    %cst_32 = arith.constant dense<0.000000e+00> : vector<32x128xf32>
    %95 = tpu.matmul %94, %92, %cst_32 {dimension_numbers = #tpu.dot_dimension_numbers<[1], [0], [0], [1], [0, 0, 1, 1], [], []>} : vector<32x32xf32>, vector<32x128xf32>, vector<32x128xf32> -> vector<32x128xf32>
    %96 = vector.extract_strided_slice %0 {offsets = [0, 2], sizes = [32, 1], strides = [1, 1]} : vector<32x12xf32> to vector<32x1xf32>
    %97 = vector.broadcast %96 : vector<32x1xf32> to vector<32x128xf32>
    %98 = arith.addf %95, %97 : vector<32x128xf32>
    %99 = vector.extract_strided_slice %3 {offsets = [224, 0], sizes = [32, 128], strides = [1, 1]} : vector<736x128xf32> to vector<32x128xf32>
    %100 = vector.extract_strided_slice %3 {offsets = [256, 0], sizes = [32, 128], strides = [1, 1]} : vector<736x128xf32> to vector<32x128xf32>
    %cst_33 = arith.constant dense<0.000000e+00> : vector<32xf32>
    %101 = vector.multi_reduction <add>, %98, %cst_33 [1] : vector<32x128xf32> to vector<32xf32>
    %102 = vector.shape_cast %101 : vector<32xf32> to vector<32x1xf32>
    %cst_34 = arith.constant 7.812500e-03 : f32
    %103 = vector.broadcast %cst_34 : f32 to vector<32x1xf32>
    %104 = arith.mulf %102, %103 : vector<32x1xf32>
    %105 = arith.mulf %98, %98 : vector<32x128xf32>
    %cst_35 = arith.constant dense<0.000000e+00> : vector<32xf32>
    %106 = vector.multi_reduction <add>, %105, %cst_35 [1] : vector<32x128xf32> to vector<32xf32>
    %107 = vector.shape_cast %106 : vector<32xf32> to vector<32x1xf32>
    %cst_36 = arith.constant 7.812500e-03 : f32
    %108 = vector.broadcast %cst_36 : f32 to vector<32x1xf32>
    %109 = arith.mulf %107, %108 : vector<32x1xf32>
    %110 = arith.mulf %104, %104 : vector<32x1xf32>
    %111 = arith.subf %109, %110 : vector<32x1xf32>
    %cst_37 = arith.constant 9.99999974E-6 : f32
    %112 = vector.broadcast %cst_37 : f32 to vector<32x1xf32>
    %113 = arith.addf %111, %112 : vector<32x1xf32>
    %114 = math.rsqrt %113 : vector<32x1xf32>
    %115 = vector.broadcast %114 : vector<32x1xf32> to vector<32x128xf32>
    %116 = arith.mulf %99, %115 : vector<32x128xf32>
    %117 = vector.broadcast %104 : vector<32x1xf32> to vector<32x128xf32>
    %118 = arith.mulf %117, %116 : vector<32x128xf32>
    %119 = arith.subf %100, %118 : vector<32x128xf32>
    %120 = arith.mulf %98, %116 : vector<32x128xf32>
    %121 = arith.addf %120, %119 : vector<32x128xf32>
    %cst_38 = arith.constant 0.000000e+00 : f32
    %122 = vector.broadcast %cst_38 : f32 to vector<32x128xf32>
    %123 = arith.maximumf %121, %122 : vector<32x128xf32>
    %c3 = arith.constant 3 : index
    %c0_39 = arith.constant 0 : index
    %c0_40 = arith.constant 0 : index
    %124 = vector.load %arg2[%c3, %c0_39, %c0_40] : memref<10x32x32xf32, #tpu.memory_space<vmem>>, vector<1x32x32xf32>
    %125 = vector.shape_cast %124 : vector<1x32x32xf32> to vector<32x32xf32>
    %cst_41 = arith.constant dense<0.000000e+00> : vector<32x128xf32>
    %126 = tpu.matmul %125, %123, %cst_41 {dimension_numbers = #tpu.dot_dimension_numbers<[1], [0], [0], [1], [0, 0, 1, 1], [], []>} : vector<32x32xf32>, vector<32x128xf32>, vector<32x128xf32> -> vector<32x128xf32>
    %127 = vector.extract_strided_slice %0 {offsets = [0, 3], sizes = [32, 1], strides = [1, 1]} : vector<32x12xf32> to vector<32x1xf32>
    %128 = vector.broadcast %127 : vector<32x1xf32> to vector<32x128xf32>
    %129 = arith.addf %126, %128 : vector<32x128xf32>
    %130 = arith.addf %67, %129 : vector<32x128xf32>
    %131 = vector.extract_strided_slice %3 {offsets = [288, 0], sizes = [32, 128], strides = [1, 1]} : vector<736x128xf32> to vector<32x128xf32>
    %132 = vector.extract_strided_slice %3 {offsets = [320, 0], sizes = [32, 128], strides = [1, 1]} : vector<736x128xf32> to vector<32x128xf32>
    %cst_42 = arith.constant dense<0.000000e+00> : vector<32xf32>
    %133 = vector.multi_reduction <add>, %130, %cst_42 [1] : vector<32x128xf32> to vector<32xf32>
    %134 = vector.shape_cast %133 : vector<32xf32> to vector<32x1xf32>
    %cst_43 = arith.constant 7.812500e-03 : f32
    %135 = vector.broadcast %cst_43 : f32 to vector<32x1xf32>
    %136 = arith.mulf %134, %135 : vector<32x1xf32>
    %137 = arith.mulf %130, %130 : vector<32x128xf32>
    %cst_44 = arith.constant dense<0.000000e+00> : vector<32xf32>
    %138 = vector.multi_reduction <add>, %137, %cst_44 [1] : vector<32x128xf32> to vector<32xf32>
    %139 = vector.shape_cast %138 : vector<32xf32> to vector<32x1xf32>
    %cst_45 = arith.constant 7.812500e-03 : f32
    %140 = vector.broadcast %cst_45 : f32 to vector<32x1xf32>
    %141 = arith.mulf %139, %140 : vector<32x1xf32>
    %142 = arith.mulf %136, %136 : vector<32x1xf32>
    %143 = arith.subf %141, %142 : vector<32x1xf32>
    %cst_46 = arith.constant 9.99999974E-6 : f32
    %144 = vector.broadcast %cst_46 : f32 to vector<32x1xf32>
    %145 = arith.addf %143, %144 : vector<32x1xf32>
    %146 = math.rsqrt %145 : vector<32x1xf32>
    %147 = vector.broadcast %146 : vector<32x1xf32> to vector<32x128xf32>
    %148 = arith.mulf %131, %147 : vector<32x128xf32>
    %149 = vector.broadcast %136 : vector<32x1xf32> to vector<32x128xf32>
    %150 = arith.mulf %149, %148 : vector<32x128xf32>
    %151 = arith.subf %132, %150 : vector<32x128xf32>
    %152 = arith.mulf %130, %148 : vector<32x128xf32>
    %153 = arith.addf %152, %151 : vector<32x128xf32>
    %cst_47 = arith.constant 0.000000e+00 : f32
    %154 = vector.broadcast %cst_47 : f32 to vector<32x128xf32>
    %155 = arith.maximumf %153, %154 : vector<32x128xf32>
    %c4 = arith.constant 4 : index
    %c0_48 = arith.constant 0 : index
    %c0_49 = arith.constant 0 : index
    %156 = vector.load %arg2[%c4, %c0_48, %c0_49] : memref<10x32x32xf32, #tpu.memory_space<vmem>>, vector<1x32x32xf32>
    %157 = vector.shape_cast %156 : vector<1x32x32xf32> to vector<32x32xf32>
    %cst_50 = arith.constant dense<0.000000e+00> : vector<32x128xf32>
    %158 = tpu.matmul %157, %155, %cst_50 {dimension_numbers = #tpu.dot_dimension_numbers<[1], [0], [0], [1], [0, 0, 1, 1], [], []>} : vector<32x32xf32>, vector<32x128xf32>, vector<32x128xf32> -> vector<32x128xf32>
    %159 = vector.extract_strided_slice %0 {offsets = [0, 4], sizes = [32, 1], strides = [1, 1]} : vector<32x12xf32> to vector<32x1xf32>
    %160 = vector.broadcast %159 : vector<32x1xf32> to vector<32x128xf32>
    %161 = arith.addf %158, %160 : vector<32x128xf32>
    %162 = vector.extract_strided_slice %3 {offsets = [352, 0], sizes = [32, 128], strides = [1, 1]} : vector<736x128xf32> to vector<32x128xf32>
    %163 = vector.extract_strided_slice %3 {offsets = [384, 0], sizes = [32, 128], strides = [1, 1]} : vector<736x128xf32> to vector<32x128xf32>
    %cst_51 = arith.constant dense<0.000000e+00> : vector<32xf32>
    %164 = vector.multi_reduction <add>, %161, %cst_51 [1] : vector<32x128xf32> to vector<32xf32>
    %165 = vector.shape_cast %164 : vector<32xf32> to vector<32x1xf32>
    %cst_52 = arith.constant 7.812500e-03 : f32
    %166 = vector.broadcast %cst_52 : f32 to vector<32x1xf32>
    %167 = arith.mulf %165, %166 : vector<32x1xf32>
    %168 = arith.mulf %161, %161 : vector<32x128xf32>
    %cst_53 = arith.constant dense<0.000000e+00> : vector<32xf32>
    %169 = vector.multi_reduction <add>, %168, %cst_53 [1] : vector<32x128xf32> to vector<32xf32>
    %170 = vector.shape_cast %169 : vector<32xf32> to vector<32x1xf32>
    %cst_54 = arith.constant 7.812500e-03 : f32
    %171 = vector.broadcast %cst_54 : f32 to vector<32x1xf32>
    %172 = arith.mulf %170, %171 : vector<32x1xf32>
    %173 = arith.mulf %167, %167 : vector<32x1xf32>
    %174 = arith.subf %172, %173 : vector<32x1xf32>
    %cst_55 = arith.constant 9.99999974E-6 : f32
    %175 = vector.broadcast %cst_55 : f32 to vector<32x1xf32>
    %176 = arith.addf %174, %175 : vector<32x1xf32>
    %177 = math.rsqrt %176 : vector<32x1xf32>
    %178 = vector.broadcast %177 : vector<32x1xf32> to vector<32x128xf32>
    %179 = arith.mulf %162, %178 : vector<32x128xf32>
    %180 = vector.broadcast %167 : vector<32x1xf32> to vector<32x128xf32>
    %181 = arith.mulf %180, %179 : vector<32x128xf32>
    %182 = arith.subf %163, %181 : vector<32x128xf32>
    %183 = arith.mulf %161, %179 : vector<32x128xf32>
    %184 = arith.addf %183, %182 : vector<32x128xf32>
    %cst_56 = arith.constant 0.000000e+00 : f32
    %185 = vector.broadcast %cst_56 : f32 to vector<32x128xf32>
    %186 = arith.maximumf %184, %185 : vector<32x128xf32>
    %c5 = arith.constant 5 : index
    %c0_57 = arith.constant 0 : index
    %c0_58 = arith.constant 0 : index
    %187 = vector.load %arg2[%c5, %c0_57, %c0_58] : memref<10x32x32xf32, #tpu.memory_space<vmem>>, vector<1x32x32xf32>
    %188 = vector.shape_cast %187 : vector<1x32x32xf32> to vector<32x32xf32>
    %cst_59 = arith.constant dense<0.000000e+00> : vector<32x128xf32>
    %189 = tpu.matmul %188, %186, %cst_59 {dimension_numbers = #tpu.dot_dimension_numbers<[1], [0], [0], [1], [0, 0, 1, 1], [], []>} : vector<32x32xf32>, vector<32x128xf32>, vector<32x128xf32> -> vector<32x128xf32>
    %190 = vector.extract_strided_slice %0 {offsets = [0, 5], sizes = [32, 1], strides = [1, 1]} : vector<32x12xf32> to vector<32x1xf32>
    %191 = vector.broadcast %190 : vector<32x1xf32> to vector<32x128xf32>
    %192 = arith.addf %189, %191 : vector<32x128xf32>
    %193 = arith.addf %130, %192 : vector<32x128xf32>
    %194 = vector.extract_strided_slice %3 {offsets = [416, 0], sizes = [32, 128], strides = [1, 1]} : vector<736x128xf32> to vector<32x128xf32>
    %195 = vector.extract_strided_slice %3 {offsets = [448, 0], sizes = [32, 128], strides = [1, 1]} : vector<736x128xf32> to vector<32x128xf32>
    %cst_60 = arith.constant dense<0.000000e+00> : vector<32xf32>
    %196 = vector.multi_reduction <add>, %193, %cst_60 [1] : vector<32x128xf32> to vector<32xf32>
    %197 = vector.shape_cast %196 : vector<32xf32> to vector<32x1xf32>
    %cst_61 = arith.constant 7.812500e-03 : f32
    %198 = vector.broadcast %cst_61 : f32 to vector<32x1xf32>
    %199 = arith.mulf %197, %198 : vector<32x1xf32>
    %200 = arith.mulf %193, %193 : vector<32x128xf32>
    %cst_62 = arith.constant dense<0.000000e+00> : vector<32xf32>
    %201 = vector.multi_reduction <add>, %200, %cst_62 [1] : vector<32x128xf32> to vector<32xf32>
    %202 = vector.shape_cast %201 : vector<32xf32> to vector<32x1xf32>
    %cst_63 = arith.constant 7.812500e-03 : f32
    %203 = vector.broadcast %cst_63 : f32 to vector<32x1xf32>
    %204 = arith.mulf %202, %203 : vector<32x1xf32>
    %205 = arith.mulf %199, %199 : vector<32x1xf32>
    %206 = arith.subf %204, %205 : vector<32x1xf32>
    %cst_64 = arith.constant 9.99999974E-6 : f32
    %207 = vector.broadcast %cst_64 : f32 to vector<32x1xf32>
    %208 = arith.addf %206, %207 : vector<32x1xf32>
    %209 = math.rsqrt %208 : vector<32x1xf32>
    %210 = vector.broadcast %209 : vector<32x1xf32> to vector<32x128xf32>
    %211 = arith.mulf %194, %210 : vector<32x128xf32>
    %212 = vector.broadcast %199 : vector<32x1xf32> to vector<32x128xf32>
    %213 = arith.mulf %212, %211 : vector<32x128xf32>
    %214 = arith.subf %195, %213 : vector<32x128xf32>
    %215 = arith.mulf %193, %211 : vector<32x128xf32>
    %216 = arith.addf %215, %214 : vector<32x128xf32>
    %cst_65 = arith.constant 0.000000e+00 : f32
    %217 = vector.broadcast %cst_65 : f32 to vector<32x128xf32>
    %218 = arith.maximumf %216, %217 : vector<32x128xf32>
    %c6 = arith.constant 6 : index
    %c0_66 = arith.constant 0 : index
    %c0_67 = arith.constant 0 : index
    %219 = vector.load %arg2[%c6, %c0_66, %c0_67] : memref<10x32x32xf32, #tpu.memory_space<vmem>>, vector<1x32x32xf32>
    %220 = vector.shape_cast %219 : vector<1x32x32xf32> to vector<32x32xf32>
    %cst_68 = arith.constant dense<0.000000e+00> : vector<32x128xf32>
    %221 = tpu.matmul %220, %218, %cst_68 {dimension_numbers = #tpu.dot_dimension_numbers<[1], [0], [0], [1], [0, 0, 1, 1], [], []>} : vector<32x32xf32>, vector<32x128xf32>, vector<32x128xf32> -> vector<32x128xf32>
    %222 = vector.extract_strided_slice %0 {offsets = [0, 6], sizes = [32, 1], strides = [1, 1]} : vector<32x12xf32> to vector<32x1xf32>
    %223 = vector.broadcast %222 : vector<32x1xf32> to vector<32x128xf32>
    %224 = arith.addf %221, %223 : vector<32x128xf32>
    %225 = vector.extract_strided_slice %3 {offsets = [480, 0], sizes = [32, 128], strides = [1, 1]} : vector<736x128xf32> to vector<32x128xf32>
    %226 = vector.extract_strided_slice %3 {offsets = [512, 0], sizes = [32, 128], strides = [1, 1]} : vector<736x128xf32> to vector<32x128xf32>
    %cst_69 = arith.constant dense<0.000000e+00> : vector<32xf32>
    %227 = vector.multi_reduction <add>, %224, %cst_69 [1] : vector<32x128xf32> to vector<32xf32>
    %228 = vector.shape_cast %227 : vector<32xf32> to vector<32x1xf32>
    %cst_70 = arith.constant 7.812500e-03 : f32
    %229 = vector.broadcast %cst_70 : f32 to vector<32x1xf32>
    %230 = arith.mulf %228, %229 : vector<32x1xf32>
    %231 = arith.mulf %224, %224 : vector<32x128xf32>
    %cst_71 = arith.constant dense<0.000000e+00> : vector<32xf32>
    %232 = vector.multi_reduction <add>, %231, %cst_71 [1] : vector<32x128xf32> to vector<32xf32>
    %233 = vector.shape_cast %232 : vector<32xf32> to vector<32x1xf32>
    %cst_72 = arith.constant 7.812500e-03 : f32
    %234 = vector.broadcast %cst_72 : f32 to vector<32x1xf32>
    %235 = arith.mulf %233, %234 : vector<32x1xf32>
    %236 = arith.mulf %230, %230 : vector<32x1xf32>
    %237 = arith.subf %235, %236 : vector<32x1xf32>
    %cst_73 = arith.constant 9.99999974E-6 : f32
    %238 = vector.broadcast %cst_73 : f32 to vector<32x1xf32>
    %239 = arith.addf %237, %238 : vector<32x1xf32>
    %240 = math.rsqrt %239 : vector<32x1xf32>
    %241 = vector.broadcast %240 : vector<32x1xf32> to vector<32x128xf32>
    %242 = arith.mulf %225, %241 : vector<32x128xf32>
    %243 = vector.broadcast %230 : vector<32x1xf32> to vector<32x128xf32>
    %244 = arith.mulf %243, %242 : vector<32x128xf32>
    %245 = arith.subf %226, %244 : vector<32x128xf32>
    %246 = arith.mulf %224, %242 : vector<32x128xf32>
    %247 = arith.addf %246, %245 : vector<32x128xf32>
    %cst_74 = arith.constant 0.000000e+00 : f32
    %248 = vector.broadcast %cst_74 : f32 to vector<32x128xf32>
    %249 = arith.maximumf %247, %248 : vector<32x128xf32>
    %c7 = arith.constant 7 : index
    %c0_75 = arith.constant 0 : index
    %c0_76 = arith.constant 0 : index
    %250 = vector.load %arg2[%c7, %c0_75, %c0_76] : memref<10x32x32xf32, #tpu.memory_space<vmem>>, vector<1x32x32xf32>
    %251 = vector.shape_cast %250 : vector<1x32x32xf32> to vector<32x32xf32>
    %cst_77 = arith.constant dense<0.000000e+00> : vector<32x128xf32>
    %252 = tpu.matmul %251, %249, %cst_77 {dimension_numbers = #tpu.dot_dimension_numbers<[1], [0], [0], [1], [0, 0, 1, 1], [], []>} : vector<32x32xf32>, vector<32x128xf32>, vector<32x128xf32> -> vector<32x128xf32>
    %253 = vector.extract_strided_slice %0 {offsets = [0, 7], sizes = [32, 1], strides = [1, 1]} : vector<32x12xf32> to vector<32x1xf32>
    %254 = vector.broadcast %253 : vector<32x1xf32> to vector<32x128xf32>
    %255 = arith.addf %252, %254 : vector<32x128xf32>
    %256 = arith.addf %193, %255 : vector<32x128xf32>
    %257 = vector.extract_strided_slice %3 {offsets = [544, 0], sizes = [32, 128], strides = [1, 1]} : vector<736x128xf32> to vector<32x128xf32>
    %258 = vector.extract_strided_slice %3 {offsets = [576, 0], sizes = [32, 128], strides = [1, 1]} : vector<736x128xf32> to vector<32x128xf32>
    %cst_78 = arith.constant dense<0.000000e+00> : vector<32xf32>
    %259 = vector.multi_reduction <add>, %256, %cst_78 [1] : vector<32x128xf32> to vector<32xf32>
    %260 = vector.shape_cast %259 : vector<32xf32> to vector<32x1xf32>
    %cst_79 = arith.constant 7.812500e-03 : f32
    %261 = vector.broadcast %cst_79 : f32 to vector<32x1xf32>
    %262 = arith.mulf %260, %261 : vector<32x1xf32>
    %263 = arith.mulf %256, %256 : vector<32x128xf32>
    %cst_80 = arith.constant dense<0.000000e+00> : vector<32xf32>
    %264 = vector.multi_reduction <add>, %263, %cst_80 [1] : vector<32x128xf32> to vector<32xf32>
    %265 = vector.shape_cast %264 : vector<32xf32> to vector<32x1xf32>
    %cst_81 = arith.constant 7.812500e-03 : f32
    %266 = vector.broadcast %cst_81 : f32 to vector<32x1xf32>
    %267 = arith.mulf %265, %266 : vector<32x1xf32>
    %268 = arith.mulf %262, %262 : vector<32x1xf32>
    %269 = arith.subf %267, %268 : vector<32x1xf32>
    %cst_82 = arith.constant 9.99999974E-6 : f32
    %270 = vector.broadcast %cst_82 : f32 to vector<32x1xf32>
    %271 = arith.addf %269, %270 : vector<32x1xf32>
    %272 = math.rsqrt %271 : vector<32x1xf32>
    %273 = vector.broadcast %272 : vector<32x1xf32> to vector<32x128xf32>
    %274 = arith.mulf %257, %273 : vector<32x128xf32>
    %275 = vector.broadcast %262 : vector<32x1xf32> to vector<32x128xf32>
    %276 = arith.mulf %275, %274 : vector<32x128xf32>
    %277 = arith.subf %258, %276 : vector<32x128xf32>
    %278 = arith.mulf %256, %274 : vector<32x128xf32>
    %279 = arith.addf %278, %277 : vector<32x128xf32>
    %cst_83 = arith.constant 0.000000e+00 : f32
    %280 = vector.broadcast %cst_83 : f32 to vector<32x128xf32>
    %281 = arith.maximumf %279, %280 : vector<32x128xf32>
    %c8 = arith.constant 8 : index
    %c0_84 = arith.constant 0 : index
    %c0_85 = arith.constant 0 : index
    %282 = vector.load %arg2[%c8, %c0_84, %c0_85] : memref<10x32x32xf32, #tpu.memory_space<vmem>>, vector<1x32x32xf32>
    %283 = vector.shape_cast %282 : vector<1x32x32xf32> to vector<32x32xf32>
    %cst_86 = arith.constant dense<0.000000e+00> : vector<32x128xf32>
    %284 = tpu.matmul %283, %281, %cst_86 {dimension_numbers = #tpu.dot_dimension_numbers<[1], [0], [0], [1], [0, 0, 1, 1], [], []>} : vector<32x32xf32>, vector<32x128xf32>, vector<32x128xf32> -> vector<32x128xf32>
    %285 = vector.extract_strided_slice %0 {offsets = [0, 8], sizes = [32, 1], strides = [1, 1]} : vector<32x12xf32> to vector<32x1xf32>
    %286 = vector.broadcast %285 : vector<32x1xf32> to vector<32x128xf32>
    %287 = arith.addf %284, %286 : vector<32x128xf32>
    %288 = vector.extract_strided_slice %3 {offsets = [608, 0], sizes = [32, 128], strides = [1, 1]} : vector<736x128xf32> to vector<32x128xf32>
    %289 = vector.extract_strided_slice %3 {offsets = [640, 0], sizes = [32, 128], strides = [1, 1]} : vector<736x128xf32> to vector<32x128xf32>
    %cst_87 = arith.constant dense<0.000000e+00> : vector<32xf32>
    %290 = vector.multi_reduction <add>, %287, %cst_87 [1] : vector<32x128xf32> to vector<32xf32>
    %291 = vector.shape_cast %290 : vector<32xf32> to vector<32x1xf32>
    %cst_88 = arith.constant 7.812500e-03 : f32
    %292 = vector.broadcast %cst_88 : f32 to vector<32x1xf32>
    %293 = arith.mulf %291, %292 : vector<32x1xf32>
    %294 = arith.mulf %287, %287 : vector<32x128xf32>
    %cst_89 = arith.constant dense<0.000000e+00> : vector<32xf32>
    %295 = vector.multi_reduction <add>, %294, %cst_89 [1] : vector<32x128xf32> to vector<32xf32>
    %296 = vector.shape_cast %295 : vector<32xf32> to vector<32x1xf32>
    %cst_90 = arith.constant 7.812500e-03 : f32
    %297 = vector.broadcast %cst_90 : f32 to vector<32x1xf32>
    %298 = arith.mulf %296, %297 : vector<32x1xf32>
    %299 = arith.mulf %293, %293 : vector<32x1xf32>
    %300 = arith.subf %298, %299 : vector<32x1xf32>
    %cst_91 = arith.constant 9.99999974E-6 : f32
    %301 = vector.broadcast %cst_91 : f32 to vector<32x1xf32>
    %302 = arith.addf %300, %301 : vector<32x1xf32>
    %303 = math.rsqrt %302 : vector<32x1xf32>
    %304 = vector.broadcast %303 : vector<32x1xf32> to vector<32x128xf32>
    %305 = arith.mulf %288, %304 : vector<32x128xf32>
    %306 = vector.broadcast %293 : vector<32x1xf32> to vector<32x128xf32>
    %307 = arith.mulf %306, %305 : vector<32x128xf32>
    %308 = arith.subf %289, %307 : vector<32x128xf32>
    %309 = arith.mulf %287, %305 : vector<32x128xf32>
    %310 = arith.addf %309, %308 : vector<32x128xf32>
    %cst_92 = arith.constant 0.000000e+00 : f32
    %311 = vector.broadcast %cst_92 : f32 to vector<32x128xf32>
    %312 = arith.maximumf %310, %311 : vector<32x128xf32>
    %c9 = arith.constant 9 : index
    %c0_93 = arith.constant 0 : index
    %c0_94 = arith.constant 0 : index
    %313 = vector.load %arg2[%c9, %c0_93, %c0_94] : memref<10x32x32xf32, #tpu.memory_space<vmem>>, vector<1x32x32xf32>
    %314 = vector.shape_cast %313 : vector<1x32x32xf32> to vector<32x32xf32>
    %cst_95 = arith.constant dense<0.000000e+00> : vector<32x128xf32>
    %315 = tpu.matmul %314, %312, %cst_95 {dimension_numbers = #tpu.dot_dimension_numbers<[1], [0], [0], [1], [0, 0, 1, 1], [], []>} : vector<32x32xf32>, vector<32x128xf32>, vector<32x128xf32> -> vector<32x128xf32>
    %316 = vector.extract_strided_slice %0 {offsets = [0, 9], sizes = [32, 1], strides = [1, 1]} : vector<32x12xf32> to vector<32x1xf32>
    %317 = vector.broadcast %316 : vector<32x1xf32> to vector<32x128xf32>
    %318 = arith.addf %315, %317 : vector<32x128xf32>
    %319 = arith.addf %256, %318 : vector<32x128xf32>
    %320 = vector.extract_strided_slice %3 {offsets = [672, 0], sizes = [32, 128], strides = [1, 1]} : vector<736x128xf32> to vector<32x128xf32>
    %321 = vector.extract_strided_slice %3 {offsets = [704, 0], sizes = [32, 128], strides = [1, 1]} : vector<736x128xf32> to vector<32x128xf32>
    %cst_96 = arith.constant dense<0.000000e+00> : vector<32xf32>
    %322 = vector.multi_reduction <add>, %319, %cst_96 [1] : vector<32x128xf32> to vector<32xf32>
    %323 = vector.shape_cast %322 : vector<32xf32> to vector<32x1xf32>
    %cst_97 = arith.constant 7.812500e-03 : f32
    %324 = vector.broadcast %cst_97 : f32 to vector<32x1xf32>
    %325 = arith.mulf %323, %324 : vector<32x1xf32>
    %326 = arith.mulf %319, %319 : vector<32x128xf32>
    %cst_98 = arith.constant dense<0.000000e+00> : vector<32xf32>
    %327 = vector.multi_reduction <add>, %326, %cst_98 [1] : vector<32x128xf32> to vector<32xf32>
    %328 = vector.shape_cast %327 : vector<32xf32> to vector<32x1xf32>
    %cst_99 = arith.constant 7.812500e-03 : f32
    %329 = vector.broadcast %cst_99 : f32 to vector<32x1xf32>
    %330 = arith.mulf %328, %329 : vector<32x1xf32>
    %331 = arith.mulf %325, %325 : vector<32x1xf32>
    %332 = arith.subf %330, %331 : vector<32x1xf32>
    %cst_100 = arith.constant 9.99999974E-6 : f32
    %333 = vector.broadcast %cst_100 : f32 to vector<32x1xf32>
    %334 = arith.addf %332, %333 : vector<32x1xf32>
    %335 = math.rsqrt %334 : vector<32x1xf32>
    %336 = vector.broadcast %335 : vector<32x1xf32> to vector<32x128xf32>
    %337 = arith.mulf %320, %336 : vector<32x128xf32>
    %338 = vector.broadcast %325 : vector<32x1xf32> to vector<32x128xf32>
    %339 = arith.mulf %338, %337 : vector<32x128xf32>
    %340 = arith.subf %321, %339 : vector<32x128xf32>
    %341 = arith.mulf %319, %337 : vector<32x128xf32>
    %342 = arith.addf %341, %340 : vector<32x128xf32>
    %cst_101 = arith.constant 0.000000e+00 : f32
    %343 = vector.broadcast %cst_101 : f32 to vector<32x128xf32>
    %344 = arith.maximumf %342, %343 : vector<32x128xf32>
    %345 = vector.extract_strided_slice %0 {offsets = [0, 10], sizes = [32, 1], strides = [1, 1]} : vector<32x12xf32> to vector<32x1xf32>
    %346 = vector.extract_strided_slice %0 {offsets = [0, 11], sizes = [1, 1], strides = [1, 1]} : vector<32x12xf32> to vector<1x1xf32>
    %347 = vector.broadcast %345 : vector<32x1xf32> to vector<32x128xf32>
    %348 = arith.mulf %344, %347 : vector<32x128xf32>
    %cst_102 = arith.constant dense<0.000000e+00> : vector<128xf32>
    %349 = vector.multi_reduction <add>, %348, %cst_102 [0] : vector<32x128xf32> to vector<128xf32>
    %350 = vector.shape_cast %349 : vector<128xf32> to vector<1x128xf32>
    %351 = vector.broadcast %346 : vector<1x1xf32> to vector<1x128xf32>
    %352 = arith.addf %350, %351 : vector<1x128xf32>
    %c0_103 = arith.constant 0 : index
    %c0_104 = arith.constant 0 : index
    %353 = vector.load %arg4[%c0_103, %c0_104] : memref<1x128xf32, #tpu.memory_space<vmem>>, vector<1x128xf32>
    tpu.vector_store %arg4[%c0_103, %c0_104], %352 {strides = array<i32>} : memref<1x128xf32, #tpu.memory_space<vmem>>, vector<1x128xf32>,
    return
  }
}

</mosaic_0001>

<llo_original>
// kernel: decoder_cbatchnorm.1
$region0: #{decoder_cbatchnorm.1}
  #allocation0 [shape = 'u32[]', space=smem, size = 0x4, offset = 0x4, fixed_abs, tag = 'smem constant byte address 0x4 - core index']
  #allocation1 [shape = 'u32[72,128]{1,0:T(1,128)}', space=vmem, size = 0x9000, scoped, tag = 'internal scratch']
  %s0 = inlined_call_operand.vmem [shape: f32[36,128], index: 0, kind: input, shape index: {}]
  %s1 = inlined_call_operand.vmem [shape: f32[736,36], index: 1, kind: input, shape index: {}]
  %s2 = inlined_call_operand.vmem [shape: f32[10,32,32], index: 2, kind: input, shape index: {}]
  %s3 = inlined_call_operand.vmem [shape: f32[32,12], index: 3, kind: input, shape index: {}]
  %s4 = inlined_call_operand.vmem [shape: f32[1,128], index: 4, kind: output, shape index: {}]
  %s5 = sld [smem:[#allocation0]]
  $region26: #{decoder_cbatchnorm.1} parent=0
    _
  %s7 = ssub.s32 1, %s5
  %s8 = scalar_select 0, %s7, %s5
  // Predicated region
  $region2: #{decoder_cbatchnorm.1} parent=0 // pred_check
    _
  $region3: #{decoder_cbatchnorm.1} parent=0 // pred_check_branch
    %10 = sbr.rel (0) target = $region5
  $region4: #{decoder_cbatchnorm.1} parent=0 // pred_region
    _
  $region5: #{decoder_cbatchnorm.1} parent=0 // pred_fallthru
    _
  // Predicated region
  $region6: #{decoder_cbatchnorm.1} parent=0 // pred_check
    _
  $region7: #{decoder_cbatchnorm.1} parent=0 // pred_check_branch
    %12 = sbr.rel (0) target = $region9
  $region8: #{decoder_cbatchnorm.1} parent=0 // pred_region
    _
  $region9: #{decoder_cbatchnorm.1} parent=0 // pred_fallthru
    _
  // Predicated region
  $region10: #{decoder_cbatchnorm.1} parent=0 // pred_check
    _
  $region11: #{decoder_cbatchnorm.1} parent=0 // pred_check_branch
    %14 = sbr.rel (0) target = $region13
  $region12: #{decoder_cbatchnorm.1} parent=0 // pred_region
    _
  $region13: #{decoder_cbatchnorm.1} parent=0 // pred_fallthru
    _
  // Predicated region
  $region14: #{decoder_cbatchnorm.1} parent=0 // pred_check
    _
  $region15: #{decoder_cbatchnorm.1} parent=0 // pred_check_branch
    %16 = sbr.rel (0) target = $region17
  $region16: #{decoder_cbatchnorm.1} parent=0 // pred_region
    _
  $region17: #{decoder_cbatchnorm.1} parent=0 // pred_fallthru
    _
  %v17 = vld [vmem:[%s3] sm:$0xff]
  %v18 = vld [vmem:[%s3 + $0x8] sm:$0xff]
  %v19 = vld [vmem:[%s3 + $0x10] sm:$0xff]
  %v20 = vld [vmem:[%s3 + $0x18] sm:$0xff]
  %v21 = vld [vmem:[%s1] sm:$0xff]
  %v22 = vld [vmem:[%s1 + $0x8] sm:$0xff]
  %v23 = vld [vmem:[%s1 + $0x10] sm:$0xff]
  %v24 = vld [vmem:[%s1 + $0x18] sm:$0xff]
  %v25 = vld [vmem:[%s1 + $0x20] sm:$0xff]
  %v26 = vld [vmem:[%s1 + $0x28] sm:$0xff]
  %v27 = vld [vmem:[%s1 + $0x30] sm:$0xff]
  %v28 = vld [vmem:[%s1 + $0x38] sm:$0xff]
  %v29 = vld [vmem:[%s1 + $0x40] sm:$0xff]
  %v30 = vld [vmem:[%s1 + $0x48] sm:$0xff]
  %v31 = vld [vmem:[%s1 + $0x50] sm:$0xff]
  %v32 = vld [vmem:[%s1 + $0x58] sm:$0xff]
  %v33 = vld [vmem:[%s1 + $0x60] sm:$0xff]
  %v34 = vld [vmem:[%s1 + $0x68] sm:$0xff]
  %v35 = vld [vmem:[%s1 + $0x70] sm:$0xff]
  %v36 = vld [vmem:[%s1 + $0x78] sm:$0xff]
  %v37 = vld [vmem:[%s1 + $0x80] sm:$0xff]
  %v38 = vld [vmem:[%s1 + $0x88] sm:$0xff]
  %v39 = vld [vmem:[%s1 + $0x90] sm:$0xff]
  %v40 = vld [vmem:[%s1 + $0x98] sm:$0xff]
  %v41 = vld [vmem:[%s1 + $0xa0] sm:$0xff]
  %v42 = vld [vmem:[%s1 + $0xa8] sm:$0xff]
  %v43 = vld [vmem:[%s1 + $0xb0] sm:$0xff]
  %v44 = vld [vmem:[%s1 + $0xb8] sm:$0xff]
  %v45 = vld [vmem:[%s1 + $0xc0] sm:$0xff]
  %v46 = vld [vmem:[%s1 + $0xc8] sm:$0xff]
  %v47 = vld [vmem:[%s1 + $0xd0] sm:$0xff]
  %v48 = vld [vmem:[%s1 + $0xd8] sm:$0xff]
  %v49 = vld [vmem:[%s1 + $0xe0] sm:$0xff]
  %v50 = vld [vmem:[%s1 + $0xe8] sm:$0xff]
  %v51 = vld [vmem:[%s1 + $0xf0] sm:$0xff]
  %v52 = vld [vmem:[%s1 + $0xf8] sm:$0xff]
  %v53 = vld [vmem:[%s1 + $0x100] sm:$0xff]
  %v54 = vld [vmem:[%s1 + $0x108] sm:$0xff]
  %v55 = vld [vmem:[%s1 + $0x110] sm:$0xff]
  %v56 = vld [vmem:[%s1 + $0x118] sm:$0xff]
  %v57 = vld [vmem:[%s1 + $0x120] sm:$0xff]
  %v58 = vld [vmem:[%s1 + $0x128] sm:$0xff]
  %v59 = vld [vmem:[%s1 + $0x130] sm:$0xff]
  %v60 = vld [vmem:[%s1 + $0x138] sm:$0xff]
  %v61 = vld [vmem:[%s1 + $0x140] sm:$0xff]
  %v62 = vld [vmem:[%s1 + $0x148] sm:$0xff]
  %v63 = vld [vmem:[%s1 + $0x150] sm:$0xff]
  %v64 = vld [vmem:[%s1 + $0x158] sm:$0xff]
  %v65 = vld [vmem:[%s1 + $0x160] sm:$0xff]
  %v66 = vld [vmem:[%s1 + $0x168] sm:$0xff]
  %v67 = vld [vmem:[%s1 + $0x170] sm:$0xff]
  %v68 = vld [vmem:[%s1 + $0x178] sm:$0xff]
  %v69 = vld [vmem:[%s1 + $0x180] sm:$0xff]
  %v70 = vld [vmem:[%s1 + $0x188] sm:$0xff]
  %v71 = vld [vmem:[%s1 + $0x190] sm:$0xff]
  %v72 = vld [vmem:[%s1 + $0x198] sm:$0xff]
  %v73 = vld [vmem:[%s1 + $0x1a0] sm:$0xff]
  %v74 = vld [vmem:[%s1 + $0x1a8] sm:$0xff]
  %v75 = vld [vmem:[%s1 + $0x1b0] sm:$0xff]
  %v76 = vld [vmem:[%s1 + $0x1b8] sm:$0xff]
  %v77 = vld [vmem:[%s1 + $0x1c0] sm:$0xff]
  %v78 = vld [vmem:[%s1 + $0x1c8] sm:$0xff]
  %v79 = vld [vmem:[%s1 + $0x1d0] sm:$0xff]
  %v80 = vld [vmem:[%s1 + $0x1d8] sm:$0xff]
  %v81 = vld [vmem:[%s1 + $0x1e0] sm:$0xff]
  %v82 = vld [vmem:[%s1 + $0x1e8] sm:$0xff]
  %v83 = vld [vmem:[%s1 + $0x1f0] sm:$0xff]
  %v84 = vld [vmem:[%s1 + $0x1f8] sm:$0xff]
  %v85 = vld [vmem:[%s1 + $0x200] sm:$0xff]
  %v86 = vld [vmem:[%s1 + $0x208] sm:$0xff]
  %v87 = vld [vmem:[%s1 + $0x210] sm:$0xff]
  %v88 = vld [vmem:[%s1 + $0x218] sm:$0xff]
  %v89 = vld [vmem:[%s1 + $0x220] sm:$0xff]
  %v90 = vld [vmem:[%s1 + $0x228] sm:$0xff]
  %v91 = vld [vmem:[%s1 + $0x230] sm:$0xff]
  %v92 = vld [vmem:[%s1 + $0x238] sm:$0xff]
  %v93 = vld [vmem:[%s1 + $0x240] sm:$0xff]
  %v94 = vld [vmem:[%s1 + $0x248] sm:$0xff]
  %v95 = vld [vmem:[%s1 + $0x250] sm:$0xff]
  %v96 = vld [vmem:[%s1 + $0x258] sm:$0xff]
  %v97 = vld [vmem:[%s1 + $0x260] sm:$0xff]
  %v98 = vld [vmem:[%s1 + $0x268] sm:$0xff]
  %v99 = vld [vmem:[%s1 + $0x270] sm:$0xff]
  %v100 = vld [vmem:[%s1 + $0x278] sm:$0xff]
  %v101 = vld [vmem:[%s1 + $0x280] sm:$0xff]
  %v102 = vld [vmem:[%s1 + $0x288] sm:$0xff]
  %v103 = vld [vmem:[%s1 + $0x290] sm:$0xff]
  %v104 = vld [vmem:[%s1 + $0x298] sm:$0xff]
  %v105 = vld [vmem:[%s1 + $0x2a0] sm:$0xff]
  %v106 = vld [vmem:[%s1 + $0x2a8] sm:$0xff]
  %v107 = vld [vmem:[%s1 + $0x2b0] sm:$0xff]
  %v108 = vld [vmem:[%s1 + $0x2b8] sm:$0xff]
  %v109 = vld [vmem:[%s1 + $0x2c0] sm:$0xff]
  %v110 = vld [vmem:[%s1 + $0x2c8] sm:$0xff]
  %v111 = vld [vmem:[%s1 + $0x2d0] sm:$0xff]
  %v112 = vld [vmem:[%s1 + $0x2d8] sm:$0xff]
  %v113 = vld [vmem:[%s0] sm:$0xff]
  %v114 = vld [vmem:[%s0 + $0x8] sm:$0xff]
  %v115 = vld [vmem:[%s0 + $0x10] sm:$0xff]
  %v116 = vld [vmem:[%s0 + $0x18] sm:$0xff]
  %v117 = vld [vmem:[%s0 + $0x20] sm:$0xf]
  %vm118 = vcmask 293888
  %v120 = vsel %vm118, %v21, 0
  %v123 = vsel %vm118, %v22, 0
  %v126 = vsel %vm118, %v23, 0
  %v129 = vsel %vm118, %v24, 0
  %v132 = vsel %vm118, %v25, 0
  %v135 = vsel %vm118, %v26, 0
  %v138 = vsel %vm118, %v27, 0
  %v141 = vsel %vm118, %v28, 0
  %v144 = vsel %vm118, %v29, 0
  %v147 = vsel %vm118, %v30, 0
  %v150 = vsel %vm118, %v31, 0
  %v153 = vsel %vm118, %v32, 0
  %v156 = vsel %vm118, %v33, 0
  %v159 = vsel %vm118, %v34, 0
  %v162 = vsel %vm118, %v35, 0
  %v165 = vsel %vm118, %v36, 0
  %v168 = vsel %vm118, %v37, 0
  %v171 = vsel %vm118, %v38, 0
  %v174 = vsel %vm118, %v39, 0
  %v177 = vsel %vm118, %v40, 0
  %v180 = vsel %vm118, %v41, 0
  %v183 = vsel %vm118, %v42, 0
  %v186 = vsel %vm118, %v43, 0
  %v189 = vsel %vm118, %v44, 0
  %v192 = vsel %vm118, %v45, 0
  %v195 = vsel %vm118, %v46, 0
  %v198 = vsel %vm118, %v47, 0
  %v201 = vsel %vm118, %v48, 0
  %v204 = vsel %vm118, %v49, 0
  %v207 = vsel %vm118, %v50, 0
  %v210 = vsel %vm118, %v51, 0
  %v213 = vsel %vm118, %v52, 0
  %v216 = vsel %vm118, %v53, 0
  %v219 = vsel %vm118, %v54, 0
  %v222 = vsel %vm118, %v55, 0
  %v225 = vsel %vm118, %v56, 0
  %v228 = vsel %vm118, %v57, 0
  %v231 = vsel %vm118, %v58, 0
  %v234 = vsel %vm118, %v59, 0
  %v237 = vsel %vm118, %v60, 0
  %v240 = vsel %vm118, %v61, 0
  %v243 = vsel %vm118, %v62, 0
  %v246 = vsel %vm118, %v63, 0
  %v249 = vsel %vm118, %v64, 0
  %v252 = vsel %vm118, %v65, 0
  %v255 = vsel %vm118, %v66, 0
  %v258 = vsel %vm118, %v67, 0
  %v261 = vsel %vm118, %v68, 0
  %v264 = vsel %vm118, %v69, 0
  %v267 = vsel %vm118, %v70, 0
  %v270 = vsel %vm118, %v71, 0
  %v273 = vsel %vm118, %v72, 0
  %v276 = vsel %vm118, %v73, 0
  %v279 = vsel %vm118, %v74, 0
  %v282 = vsel %vm118, %v75, 0
  %v285 = vsel %vm118, %v76, 0
  %v288 = vsel %vm118, %v77, 0
  %v291 = vsel %vm118, %v78, 0
  %v294 = vsel %vm118, %v79, 0
  %v297 = vsel %vm118, %v80, 0
  %v300 = vsel %vm118, %v81, 0
  %v303 = vsel %vm118, %v82, 0
  %v306 = vsel %vm118, %v83, 0
  %v309 = vsel %vm118, %v84, 0
  %v312 = vsel %vm118, %v85, 0
  %v315 = vsel %vm118, %v86, 0
  %v318 = vsel %vm118, %v87, 0
  %v321 = vsel %vm118, %v88, 0
  %v324 = vsel %vm118, %v89, 0
  %v327 = vsel %vm118, %v90, 0
  %v330 = vsel %vm118, %v91, 0
  %v333 = vsel %vm118, %v92, 0
  %v336 = vsel %vm118, %v93, 0
  %v339 = vsel %vm118, %v94, 0
  %v342 = vsel %vm118, %v95, 0
  %v345 = vsel %vm118, %v96, 0
  %v348 = vsel %vm118, %v97, 0
  %v351 = vsel %vm118, %v98, 0
  %v354 = vsel %vm118, %v99, 0
  %v357 = vsel %vm118, %v100, 0
  %v360 = vsel %vm118, %v101, 0
  %v363 = vsel %vm118, %v102, 0
  %v366 = vsel %vm118, %v103, 0
  %v369 = vsel %vm118, %v104, 0
  %v372 = vsel %vm118, %v105, 0
  %v375 = vsel %vm118, %v106, 0
  %v378 = vsel %vm118, %v107, 0
  %v381 = vsel %vm118, %v108, 0
  %v384 = vsel %vm118, %v109, 0
  %v387 = vsel %vm118, %v110, 0
  %v390 = vsel %vm118, %v111, 0
  %v393 = vsel %vm118, %v112, 0
  %vm395 = vcmask 1043456
  %v397 = vsel %vm395, %v117, 0
  %399 = vmatpush.msra.mxu0 0.0
  %400 = vmatpush.msra.mxu0 0.0
  %401 = vmatpush.msra.mxu0 0.0
  %402 = vmatpush.msra.mxu0 0.0
  %403 = vmatpush.msra.mxu0 0.0
  %404 = vmatpush.msra.mxu0 0.0
  %405 = vmatpush.msra.mxu0 0.0
  %406 = vmatpush.msra.mxu0 0.0
  %407 = vmatpush.msra.mxu0 0.0
  %408 = vmatpush.msra.mxu0 0.0
  %409 = vmatpush.msra.mxu0 0.0
  %410 = vmatpush.msra.mxu0 %v397
  %411 = vmatpush.msra.mxu0 %v116
  %412 = vmatpush.msra.mxu0 %v115
  %413 = vmatpush.msra.mxu0 %v114
  %414 = vmatpush.msra.mxu0 %v113
  %415 = vmatmul.f32.gmra.mxu0 %v120
  %v416 = vpop.f32.mrf.mxu0
  %v417 = vadd.f32 0.0, %v416
  %418 = vmatmul.f32.gmra.mxu0 %v123
  %v419 = vpop.f32.mrf.mxu0
  %v420 = vadd.f32 0.0, %v419
  %421 = vmatmul.f32.gmra.mxu0 %v126
  %v422 = vpop.f32.mrf.mxu0
  %v423 = vadd.f32 0.0, %v422
  %424 = vmatmul.f32.gmra.mxu0 %v129
  %v425 = vpop.f32.mrf.mxu0
  %v426 = vadd.f32 0.0, %v425
  %427 = vmatmul.f32.gmra.mxu0 %v132
  %v428 = vpop.f32.mrf.mxu0
  %v429 = vadd.f32 0.0, %v428
  %430 = vmatmul.f32.gmra.mxu0 %v135
  %v431 = vpop.f32.mrf.mxu0
  %v432 = vadd.f32 0.0, %v431
  %433 = vmatmul.f32.gmra.mxu0 %v138
  %v434 = vpop.f32.mrf.mxu0
  %v435 = vadd.f32 0.0, %v434
  %436 = vmatmul.f32.gmra.mxu0 %v141
  %v437 = vpop.f32.mrf.mxu0
  %v438 = vadd.f32 0.0, %v437
  %439 = vmatmul.f32.gmra.mxu0 %v144
  %v440 = vpop.f32.mrf.mxu0
  %v441 = vadd.f32 0.0, %v440
  %442 = vmatmul.f32.gmra.mxu0 %v147
  %v443 = vpop.f32.mrf.mxu0
  %v444 = vadd.f32 0.0, %v443
  %445 = vmatmul.f32.gmra.mxu0 %v150
  %v446 = vpop.f32.mrf.mxu0
  %v447 = vadd.f32 0.0, %v446
  %448 = vmatmul.f32.gmra.mxu0 %v153
  %v449 = vpop.f32.mrf.mxu0
  %v450 = vadd.f32 0.0, %v449
  %451 = vmatmul.f32.gmra.mxu0 %v156
  %v452 = vpop.f32.mrf.mxu0
  %v453 = vadd.f32 0.0, %v452
  %454 = vmatmul.f32.gmra.mxu0 %v159
  %v455 = vpop.f32.mrf.mxu0
  %v456 = vadd.f32 0.0, %v455
  %457 = vmatmul.f32.gmra.mxu0 %v162
  %v458 = vpop.f32.mrf.mxu0
  %v459 = vadd.f32 0.0, %v458
  %460 = vmatmul.f32.gmra.mxu0 %v165
  %v461 = vpop.f32.mrf.mxu0
  %v462 = vadd.f32 0.0, %v461
  %463 = vmatmul.f32.gmra.mxu0 %v168
  %v464 = vpop.f32.mrf.mxu0
  %v465 = vadd.f32 0.0, %v464
  %466 = vmatmul.f32.gmra.mxu0 %v171
  %v467 = vpop.f32.mrf.mxu0
  %v468 = vadd.f32 0.0, %v467
  %469 = vmatmul.f32.gmra.mxu0 %v174
  %v470 = vpop.f32.mrf.mxu0
  %v471 = vadd.f32 0.0, %v470
  %472 = vmatmul.f32.gmra.mxu0 %v177
  %v473 = vpop.f32.mrf.mxu0
  %v474 = vadd.f32 0.0, %v473
  %475 = vmatmul.f32.gmra.mxu0 %v180
  %v476 = vpop.f32.mrf.mxu0
  %v477 = vadd.f32 0.0, %v476
  %478 = vmatmul.f32.gmra.mxu0 %v183
  %v479 = vpop.f32.mrf.mxu0
  %v480 = vadd.f32 0.0, %v479
  %481 = vmatmul.f32.gmra.mxu0 %v186
  %v482 = vpop.f32.mrf.mxu0
  %v483 = vadd.f32 0.0, %v482
  %484 = vmatmul.f32.gmra.mxu0 %v189
  %v485 = vpop.f32.mrf.mxu0
  %v486 = vadd.f32 0.0, %v485
  %487 = vmatmul.f32.gmra.mxu0 %v192
  %v488 = vpop.f32.mrf.mxu0
  %v489 = vadd.f32 0.0, %v488
  %490 = vmatmul.f32.gmra.mxu0 %v195
  %v491 = vpop.f32.mrf.mxu0
  %v492 = vadd.f32 0.0, %v491
  %493 = vmatmul.f32.gmra.mxu0 %v198
  %v494 = vpop.f32.mrf.mxu0
  %v495 = vadd.f32 0.0, %v494
  %496 = vmatmul.f32.gmra.mxu0 %v201
  %v497 = vpop.f32.mrf.mxu0
  %v498 = vadd.f32 0.0, %v497
  %499 = vmatmul.f32.gmra.mxu0 %v204
  %v500 = vpop.f32.mrf.mxu0
  %v501 = vadd.f32 0.0, %v500
  %502 = vmatmul.f32.gmra.mxu0 %v207
  %v503 = vpop.f32.mrf.mxu0
  %v504 = vadd.f32 0.0, %v503
  %505 = vmatmul.f32.gmra.mxu0 %v210
  %v506 = vpop.f32.mrf.mxu0
  %v507 = vadd.f32 0.0, %v506
  %508 = vmatmul.f32.gmra.mxu0 %v213
  %v509 = vpop.f32.mrf.mxu0
  %v510 = vadd.f32 0.0, %v509
  %511 = vmatmul.f32.gmra.mxu0 %v216
  %v512 = vpop.f32.mrf.mxu0
  %v513 = vadd.f32 0.0, %v512
  %514 = vmatmul.f32.gmra.mxu0 %v219
  %v515 = vpop.f32.mrf.mxu0
  %v516 = vadd.f32 0.0, %v515
  %517 = vmatmul.f32.gmra.mxu0 %v222
  %v518 = vpop.f32.mrf.mxu0
  %v519 = vadd.f32 0.0, %v518
  %520 = vmatmul.f32.gmra.mxu0 %v225
  %v521 = vpop.f32.mrf.mxu0
  %v522 = vadd.f32 0.0, %v521
  %523 = vmatmul.f32.gmra.mxu0 %v228
  %v524 = vpop.f32.mrf.mxu0
  %v525 = vadd.f32 0.0, %v524
  %526 = vmatmul.f32.gmra.mxu0 %v231
  %v527 = vpop.f32.mrf.mxu0
  %v528 = vadd.f32 0.0, %v527
  %529 = vmatmul.f32.gmra.mxu0 %v234
  %v530 = vpop.f32.mrf.mxu0
  %v531 = vadd.f32 0.0, %v530
  %532 = vmatmul.f32.gmra.mxu0 %v237
  %v533 = vpop.f32.mrf.mxu0
  %v534 = vadd.f32 0.0, %v533
  %535 = vmatmul.f32.gmra.mxu0 %v240
  %v536 = vpop.f32.mrf.mxu0
  %v537 = vadd.f32 0.0, %v536
  %538 = vmatmul.f32.gmra.mxu0 %v243
  %v539 = vpop.f32.mrf.mxu0
  %v540 = vadd.f32 0.0, %v539
  %541 = vmatmul.f32.gmra.mxu0 %v246
  %v542 = vpop.f32.mrf.mxu0
  %v543 = vadd.f32 0.0, %v542
  %544 = vmatmul.f32.gmra.mxu0 %v249
  %v545 = vpop.f32.mrf.mxu0
  %v546 = vadd.f32 0.0, %v545
  %547 = vmatmul.f32.gmra.mxu0 %v252
  %v548 = vpop.f32.mrf.mxu0
  %v549 = vadd.f32 0.0, %v548
  %550 = vmatmul.f32.gmra.mxu0 %v255
  %v551 = vpop.f32.mrf.mxu0
  %v552 = vadd.f32 0.0, %v551
  %553 = vmatmul.f32.gmra.mxu0 %v258
  %v554 = vpop.f32.mrf.mxu0
  %v555 = vadd.f32 0.0, %v554
  %556 = vmatmul.f32.gmra.mxu0 %v261
  %v557 = vpop.f32.mrf.mxu0
  %v558 = vadd.f32 0.0, %v557
  %559 = vmatmul.f32.gmra.mxu0 %v264
  %v560 = vpop.f32.mrf.mxu0
  %v561 = vadd.f32 0.0, %v560
  %562 = vmatmul.f32.gmra.mxu0 %v267
  %v563 = vpop.f32.mrf.mxu0
  %v564 = vadd.f32 0.0, %v563
  %565 = vmatmul.f32.gmra.mxu0 %v270
  %v566 = vpop.f32.mrf.mxu0
  %v567 = vadd.f32 0.0, %v566
  %568 = vmatmul.f32.gmra.mxu0 %v273
  %v569 = vpop.f32.mrf.mxu0
  %v570 = vadd.f32 0.0, %v569
  %571 = vmatmul.f32.gmra.mxu0 %v276
  %v572 = vpop.f32.mrf.mxu0
  %v573 = vadd.f32 0.0, %v572
  %574 = vmatmul.f32.gmra.mxu0 %v279
  %v575 = vpop.f32.mrf.mxu0
  %v576 = vadd.f32 0.0, %v575
  %577 = vmatmul.f32.gmra.mxu0 %v282
  %v578 = vpop.f32.mrf.mxu0
  %v579 = vadd.f32 0.0, %v578
  %580 = vmatmul.f32.gmra.mxu0 %v285
  %v581 = vpop.f32.mrf.mxu0
  %v582 = vadd.f32 0.0, %v581
  %583 = vmatmul.f32.gmra.mxu0 %v288
  %v584 = vpop.f32.mrf.mxu0
  %v585 = vadd.f32 0.0, %v584
  %586 = vmatmul.f32.gmra.mxu0 %v291
  %v587 = vpop.f32.mrf.mxu0
  %v588 = vadd.f32 0.0, %v587
  %589 = vmatmul.f32.gmra.mxu0 %v294
  %v590 = vpop.f32.mrf.mxu0
  %v591 = vadd.f32 0.0, %v590
  %592 = vmatmul.f32.gmra.mxu0 %v297
  %v593 = vpop.f32.mrf.mxu0
  %v594 = vadd.f32 0.0, %v593
  %595 = vmatmul.f32.gmra.mxu0 %v300
  %v596 = vpop.f32.mrf.mxu0
  %v597 = vadd.f32 0.0, %v596
  %598 = vmatmul.f32.gmra.mxu0 %v303
  %v599 = vpop.f32.mrf.mxu0
  %v600 = vadd.f32 0.0, %v599
  %601 = vmatmul.f32.gmra.mxu0 %v306
  %v602 = vpop.f32.mrf.mxu0
  %v603 = vadd.f32 0.0, %v602
  %604 = vmatmul.f32.gmra.mxu0 %v309
  %v605 = vpop.f32.mrf.mxu0
  %v606 = vadd.f32 0.0, %v605
  %607 = vmatmul.f32.gmra.mxu0 %v312
  %v608 = vpop.f32.mrf.mxu0
  %v609 = vadd.f32 0.0, %v608
  %610 = vmatmul.f32.gmra.mxu0 %v315
  %v611 = vpop.f32.mrf.mxu0
  %v612 = vadd.f32 0.0, %v611
  %613 = vmatmul.f32.gmra.mxu0 %v318
  %v614 = vpop.f32.mrf.mxu0
  %v615 = vadd.f32 0.0, %v614
  %616 = vmatmul.f32.gmra.mxu0 %v321
  %v617 = vpop.f32.mrf.mxu0
  %v618 = vadd.f32 0.0, %v617
  %619 = vmatmul.f32.gmra.mxu0 %v324
  %v620 = vpop.f32.mrf.mxu0
  %v621 = vadd.f32 0.0, %v620
  %622 = vmatmul.f32.gmra.mxu0 %v327
  %v623 = vpop.f32.mrf.mxu0
  %v624 = vadd.f32 0.0, %v623
  %625 = vmatmul.f32.gmra.mxu0 %v330
  %v626 = vpop.f32.mrf.mxu0
  %v627 = vadd.f32 0.0, %v626
  %628 = vmatmul.f32.gmra.mxu0 %v333
  %v629 = vpop.f32.mrf.mxu0
  %v630 = vadd.f32 0.0, %v629
  %631 = vmatmul.f32.gmra.mxu0 %v336
  %v632 = vpop.f32.mrf.mxu0
  %v633 = vadd.f32 0.0, %v632
  %634 = vmatmul.f32.gmra.mxu0 %v339
  %v635 = vpop.f32.mrf.mxu0
  %v636 = vadd.f32 0.0, %v635
  %637 = vmatmul.f32.gmra.mxu0 %v342
  %v638 = vpop.f32.mrf.mxu0
  %v639 = vadd.f32 0.0, %v638
  %640 = vmatmul.f32.gmra.mxu0 %v345
  %v641 = vpop.f32.mrf.mxu0
  %v642 = vadd.f32 0.0, %v641
  %643 = vmatmul.f32.gmra.mxu0 %v348
  %v644 = vpop.f32.mrf.mxu0
  %v645 = vadd.f32 0.0, %v644
  %646 = vmatmul.f32.gmra.mxu0 %v351
  %v647 = vpop.f32.mrf.mxu0
  %v648 = vadd.f32 0.0, %v647
  %649 = vmatmul.f32.gmra.mxu0 %v354
  %v650 = vpop.f32.mrf.mxu0
  %v651 = vadd.f32 0.0, %v650
  %652 = vmatmul.f32.gmra.mxu0 %v357
  %v653 = vpop.f32.mrf.mxu0
  %v654 = vadd.f32 0.0, %v653
  %655 = vmatmul.f32.gmra.mxu0 %v360
  %v656 = vpop.f32.mrf.mxu0
  %v657 = vadd.f32 0.0, %v656
  %658 = vmatmul.f32.gmra.mxu0 %v363
  %v659 = vpop.f32.mrf.mxu0
  %v660 = vadd.f32 0.0, %v659
  %661 = vmatmul.f32.gmra.mxu0 %v366
  %v662 = vpop.f32.mrf.mxu0
  %v663 = vadd.f32 0.0, %v662
  %664 = vmatmul.f32.gmra.mxu0 %v369
  %v665 = vpop.f32.mrf.mxu0
  %v666 = vadd.f32 0.0, %v665
  %667 = vmatmul.f32.gmra.mxu0 %v372
  %v668 = vpop.f32.mrf.mxu0
  %v669 = vadd.f32 0.0, %v668
  %670 = vmatmul.f32.gmra.mxu0 %v375
  %v671 = vpop.f32.mrf.mxu0
  %v672 = vadd.f32 0.0, %v671
  %673 = vmatmul.f32.gmra.mxu0 %v378
  %v674 = vpop.f32.mrf.mxu0
  %v675 = vadd.f32 0.0, %v674
  %676 = vmatmul.f32.gmra.mxu0 %v381
  %v677 = vpop.f32.mrf.mxu0
  %v678 = vadd.f32 0.0, %v677
  %679 = vmatmul.f32.gmra.mxu0 %v384
  %v680 = vpop.f32.mrf.mxu0
  %v681 = vadd.f32 0.0, %v680
  %682 = vmatmul.f32.gmra.mxu0 %v387
  %v683 = vpop.f32.mrf.mxu0
  %v684 = vadd.f32 0.0, %v683
  %685 = vmatmul.f32.gmra.mxu0 %v390
  %v686 = vpop.f32.mrf.mxu0
  %v687 = vadd.f32 0.0, %v686
  %688 = vmatmul.f32.gmra.mxu0 %v393
  %v689 = vpop.f32.mrf.mxu0
  %v690 = vadd.f32 0.0, %v689
  %691 = vdwg.mxu0
  %692 = vadd.xlane.f32.xlu0 %v417
  %v693 = vpop.xlane.xlu0 %692
  %694 = vadd.xlane.f32.xlu0 %v420
  %v695 = vpop.xlane.xlu0 %694
  %696 = vadd.xlane.f32.xlu0 %v423
  %v697 = vpop.xlane.xlu0 %696
  %698 = vadd.xlane.f32.xlu0 %v426
  %v699 = vpop.xlane.xlu0 %698
  %v700 = vmul.f32 %v693, 0.0078125
  %v701 = vmul.f32 %v695, 0.0078125
  %v702 = vmul.f32 %v697, 0.0078125
  %v703 = vmul.f32 %v699, 0.0078125
  %v704 = vmul.f32 %v417, %v417
  %v705 = vmul.f32 %v420, %v420
  %v706 = vmul.f32 %v423, %v423
  %v707 = vmul.f32 %v426, %v426
  %708 = vadd.xlane.f32.xlu0 %v704
  %v709 = vpop.xlane.xlu0 %708
  %710 = vadd.xlane.f32.xlu0 %v705
  %v711 = vpop.xlane.xlu0 %710
  %712 = vadd.xlane.f32.xlu0 %v706
  %v713 = vpop.xlane.xlu0 %712
  %714 = vadd.xlane.f32.xlu0 %v707
  %v715 = vpop.xlane.xlu0 %714
  %v716 = vmul.f32 %v709, 0.0078125
  %v717 = vmul.f32 %v711, 0.0078125
  %v718 = vmul.f32 %v713, 0.0078125
  %v719 = vmul.f32 %v715, 0.0078125
  %v720 = vmul.f32 %v700, %v700
  %v721 = vmul.f32 %v701, %v701
  %v722 = vmul.f32 %v702, %v702
  %v723 = vmul.f32 %v703, %v703
  %v724 = vsub.f32 %v716, %v720
  %v725 = vsub.f32 %v717, %v721
  %v726 = vsub.f32 %v718, %v722
  %v727 = vsub.f32 %v719, %v723
  %v728 = vadd.f32 %v724, 1e-05
  %v729 = vadd.f32 %v725, 1e-05
  %v730 = vadd.f32 %v726, 1e-05
  %v731 = vadd.f32 %v727, 1e-05
  %v732 = vrsqrt.pop %v728
  %v733 = vmul.f32 %v732, %v728
  %v734 = vmul.f32 %v733, %v732
  %v735 = vmul.f32 0.5, %v734
  %v736 = vsub.f32 1.5, %v735
  %v737 = vmul.f32 %v732, %v736
  %vm738 = vweird.f32 %v728
  %vm739 = vweird.f32 %v732
  %vm740 = vmor %vm738, %vm739
  %v741 = vsel %vm740, %v732, %v737
  %v742 = vrsqrt.pop %v729
  %v743 = vmul.f32 %v742, %v729
  %v744 = vmul.f32 %v743, %v742
  %v745 = vmul.f32 0.5, %v744
  %v746 = vsub.f32 1.5, %v745
  %v747 = vmul.f32 %v742, %v746
  %vm748 = vweird.f32 %v729
  %vm749 = vweird.f32 %v742
  %vm750 = vmor %vm748, %vm749
  %v751 = vsel %vm750, %v742, %v747
  %v752 = vrsqrt.pop %v730
  %v753 = vmul.f32 %v752, %v730
  %v754 = vmul.f32 %v753, %v752
  %v755 = vmul.f32 0.5, %v754
  %v756 = vsub.f32 1.5, %v755
  %v757 = vmul.f32 %v752, %v756
  %vm758 = vweird.f32 %v730
  %vm759 = vweird.f32 %v752
  %vm760 = vmor %vm758, %vm759
  %v761 = vsel %vm760, %v752, %v757
  %v762 = vrsqrt.pop %v731
  %v763 = vmul.f32 %v762, %v731
  %v764 = vmul.f32 %v763, %v762
  %v765 = vmul.f32 0.5, %v764
  %v766 = vsub.f32 1.5, %v765
  %v767 = vmul.f32 %v762, %v766
  %vm768 = vweird.f32 %v731
  %vm769 = vweird.f32 %v762
  %vm770 = vmor %vm768, %vm769
  %v771 = vsel %vm770, %v762, %v767
  %v772 = vmul.f32 %v429, %v741
  %v773 = vmul.f32 %v432, %v751
  %v774 = vmul.f32 %v435, %v761
  %v775 = vmul.f32 %v438, %v771
  %v776 = vmul.f32 %v700, %v772
  %v777 = vmul.f32 %v701, %v773
  %v778 = vmul.f32 %v702, %v774
  %v779 = vmul.f32 %v703, %v775
  %v780 = vsub.f32 %v441, %v776
  %v781 = vsub.f32 %v444, %v777
  %v782 = vsub.f32 %v447, %v778
  %v783 = vsub.f32 %v450, %v779
  %v784 = vmul.f32 %v417, %v772
  %v785 = vmul.f32 %v420, %v773
  %v786 = vmul.f32 %v423, %v774
  %v787 = vmul.f32 %v426, %v775
  %v788 = vadd.f32 %v784, %v780
  %v789 = vadd.f32 %v785, %v781
  %v790 = vadd.f32 %v786, %v782
  %v791 = vadd.f32 %v787, %v783
  %v792 = vmax.f32 %v788, 0.0
  %v793 = vmax.f32 %v789, 0.0
  %v794 = vmax.f32 %v790, 0.0
  %v795 = vmax.f32 %v791, 0.0
  %v796 = vld [vmem:[%s2] sm:$0xff]
  %v797 = vld [vmem:[%s2 + $0x8] sm:$0xff]
  %v798 = vld [vmem:[%s2 + $0x10] sm:$0xff]
  %v799 = vld [vmem:[%s2 + $0x18] sm:$0xff]
  %801 = vset.pattern.permute.xlu0 0
  %802 = vperm.xlu0 %801, %v17
  %v803 = vpop.permute.xlu0 %802
  %806 = vset.pattern.permute.xlu0 0
  %807 = vperm.xlu0 %806, %v18
  %v808 = vpop.permute.xlu0 %807
  %811 = vset.pattern.permute.xlu0 0
  %812 = vperm.xlu0 %811, %v19
  %v813 = vpop.permute.xlu0 %812
  %816 = vset.pattern.permute.xlu0 0
  %817 = vperm.xlu0 %816, %v20
  %v818 = vpop.permute.xlu0 %817
  %vm820 = vcmask 261120
  %v822 = vsel %vm820, %v796, 0
  %v825 = vsel %vm820, %v797, 0
  %v828 = vsel %vm820, %v798, 0
  %v831 = vsel %vm820, %v799, 0
  %833 = vmatpush.msra.mxu0 0.0
  %834 = vmatpush.msra.mxu0 0.0
  %835 = vmatpush.msra.mxu0 0.0
  %836 = vmatpush.msra.mxu0 0.0
  %837 = vmatpush.msra.mxu0 0.0
  %838 = vmatpush.msra.mxu0 0.0
  %839 = vmatpush.msra.mxu0 0.0
  %840 = vmatpush.msra.mxu0 0.0
  %841 = vmatpush.msra.mxu0 0.0
  %842 = vmatpush.msra.mxu0 0.0
  %843 = vmatpush.msra.mxu0 0.0
  %844 = vmatpush.msra.mxu0 0.0
  %845 = vmatpush.msra.mxu0 %v795
  %846 = vmatpush.msra.mxu0 %v794
  %847 = vmatpush.msra.mxu0 %v793
  %848 = vmatpush.msra.mxu0 %v792
  %849 = vmatmul.f32.gmra.mxu0 %v822
  %v850 = vpop.f32.mrf.mxu0
  %v851 = vadd.f32 %v803, %v850
  %852 = vmatmul.f32.gmra.mxu0 %v825
  %v853 = vpop.f32.mrf.mxu0
  %v854 = vadd.f32 %v808, %v853
  %855 = vmatmul.f32.gmra.mxu0 %v828
  %v856 = vpop.f32.mrf.mxu0
  %v857 = vadd.f32 %v813, %v856
  %858 = vmatmul.f32.gmra.mxu0 %v831
  %v859 = vpop.f32.mrf.mxu0
  %v860 = vadd.f32 %v818, %v859
  %861 = vdwg.mxu0
  %862 = vadd.xlane.f32.xlu0 %v851
  %v863 = vpop.xlane.xlu0 %862
  %864 = vadd.xlane.f32.xlu0 %v854
  %v865 = vpop.xlane.xlu0 %864
  %866 = vadd.xlane.f32.xlu0 %v857
  %v867 = vpop.xlane.xlu0 %866
  %868 = vadd.xlane.f32.xlu0 %v860
  %v869 = vpop.xlane.xlu0 %868
  %v870 = vmul.f32 %v863, 0.0078125
  %v871 = vmul.f32 %v865, 0.0078125
  %v872 = vmul.f32 %v867, 0.0078125
  %v873 = vmul.f32 %v869, 0.0078125
  %v874 = vmul.f32 %v851, %v851
  %v875 = vmul.f32 %v854, %v854
  %v876 = vmul.f32 %v857, %v857
  %v877 = vmul.f32 %v860, %v860
  %878 = vadd.xlane.f32.xlu0 %v874
  %v879 = vpop.xlane.xlu0 %878
  %880 = vadd.xlane.f32.xlu0 %v875
  %v881 = vpop.xlane.xlu0 %880
  %882 = vadd.xlane.f32.xlu0 %v876
  %v883 = vpop.xlane.xlu0 %882
  %884 = vadd.xlane.f32.xlu0 %v877
  %v885 = vpop.xlane.xlu0 %884
  %v886 = vmul.f32 %v879, 0.0078125
  %v887 = vmul.f32 %v881, 0.0078125
  %v888 = vmul.f32 %v883, 0.0078125
  %v889 = vmul.f32 %v885, 0.0078125
  %v890 = vmul.f32 %v870, %v870
  %v891 = vmul.f32 %v871, %v871
  %v892 = vmul.f32 %v872, %v872
  %v893 = vmul.f32 %v873, %v873
  %v894 = vsub.f32 %v886, %v890
  %v895 = vsub.f32 %v887, %v891
  %v896 = vsub.f32 %v888, %v892
  %v897 = vsub.f32 %v889, %v893
  %v898 = vadd.f32 %v894, 1e-05
  %v899 = vadd.f32 %v895, 1e-05
  %v900 = vadd.f32 %v896, 1e-05
  %v901 = vadd.f32 %v897, 1e-05
  %v902 = vrsqrt.pop %v898
  %v903 = vmul.f32 %v902, %v898
  %v904 = vmul.f32 %v903, %v902
  %v905 = vmul.f32 0.5, %v904
  %v906 = vsub.f32 1.5, %v905
  %v907 = vmul.f32 %v902, %v906
  %vm908 = vweird.f32 %v898
  %vm909 = vweird.f32 %v902
  %vm910 = vmor %vm908, %vm909
  %v911 = vsel %vm910, %v902, %v907
  %v912 = vrsqrt.pop %v899
  %v913 = vmul.f32 %v912, %v899
  %v914 = vmul.f32 %v913, %v912
  %v915 = vmul.f32 0.5, %v914
  %v916 = vsub.f32 1.5, %v915
  %v917 = vmul.f32 %v912, %v916
  %vm918 = vweird.f32 %v899
  %vm919 = vweird.f32 %v912
  %vm920 = vmor %vm918, %vm919
  %v921 = vsel %vm920, %v912, %v917
  %v922 = vrsqrt.pop %v900
  %v923 = vmul.f32 %v922, %v900
  %v924 = vmul.f32 %v923, %v922
  %v925 = vmul.f32 0.5, %v924
  %v926 = vsub.f32 1.5, %v925
  %v927 = vmul.f32 %v922, %v926
  %vm928 = vweird.f32 %v900
  %vm929 = vweird.f32 %v922
  %vm930 = vmor %vm928, %vm929
  %v931 = vsel %vm930, %v922, %v927
  %v932 = vrsqrt.pop %v901
  %v933 = vmul.f32 %v932, %v901
  %v934 = vmul.f32 %v933, %v932
  %v935 = vmul.f32 0.5, %v934
  %v936 = vsub.f32 1.5, %v935
  %v937 = vmul.f32 %v932, %v936
  %vm938 = vweird.f32 %v901
  %vm939 = vweird.f32 %v932
  %vm940 = vmor %vm938, %vm939
  %v941 = vsel %vm940, %v932, %v937
  %v942 = vmul.f32 %v453, %v911
  %v943 = vmul.f32 %v456, %v921
  %v944 = vmul.f32 %v459, %v931
  %v945 = vmul.f32 %v462, %v941
  %v946 = vmul.f32 %v870, %v942
  %v947 = vmul.f32 %v871, %v943
  %v948 = vmul.f32 %v872, %v944
  %v949 = vmul.f32 %v873, %v945
  %v950 = vsub.f32 %v465, %v946
  %v951 = vsub.f32 %v468, %v947
  %v952 = vsub.f32 %v471, %v948
  %v953 = vsub.f32 %v474, %v949
  %v954 = vmul.f32 %v851, %v942
  %v955 = vmul.f32 %v854, %v943
  %v956 = vmul.f32 %v857, %v944
  %v957 = vmul.f32 %v860, %v945
  %v958 = vadd.f32 %v954, %v950
  %v959 = vadd.f32 %v955, %v951
  %v960 = vadd.f32 %v956, %v952
  %v961 = vadd.f32 %v957, %v953
  %v962 = vmax.f32 %v958, 0.0
  %v963 = vmax.f32 %v959, 0.0
  %v964 = vmax.f32 %v960, 0.0
  %v965 = vmax.f32 %v961, 0.0
  %s966 = scalar_lea.vmem %s2, 32
  %v967 = vld [vmem:[%s966] sm:$0xff]
  %v968 = vld [vmem:[%s966 + $0x8] sm:$0xff]
  %v969 = vld [vmem:[%s966 + $0x10] sm:$0xff]
  %v970 = vld [vmem:[%s966 + $0x18] sm:$0xff]
  %971 = vset.pattern.permute.xlu0 1
  %972 = vperm.xlu0 %971, %v17
  %v973 = vpop.permute.xlu0 %972
  %975 = vset.pattern.permute.xlu0 1
  %976 = vperm.xlu0 %975, %v18
  %v977 = vpop.permute.xlu0 %976
  %979 = vset.pattern.permute.xlu0 1
  %980 = vperm.xlu0 %979, %v19
  %v981 = vpop.permute.xlu0 %980
  %983 = vset.pattern.permute.xlu0 1
  %984 = vperm.xlu0 %983, %v20
  %v985 = vpop.permute.xlu0 %984
  %v988 = vsel %vm820, %v967, 0
  %v991 = vsel %vm820, %v968, 0
  %v994 = vsel %vm820, %v969, 0
  %v997 = vsel %vm820, %v970, 0
  %999 = vmatpush.msra.mxu0 0.0
  %1000 = vmatpush.msra.mxu0 0.0
  %1001 = vmatpush.msra.mxu0 0.0
  %1002 = vmatpush.msra.mxu0 0.0
  %1003 = vmatpush.msra.mxu0 0.0
  %1004 = vmatpush.msra.mxu0 0.0
  %1005 = vmatpush.msra.mxu0 0.0
  %1006 = vmatpush.msra.mxu0 0.0
  %1007 = vmatpush.msra.mxu0 0.0
  %1008 = vmatpush.msra.mxu0 0.0
  %1009 = vmatpush.msra.mxu0 0.0
  %1010 = vmatpush.msra.mxu0 0.0
  %1011 = vmatpush.msra.mxu0 %v965
  %1012 = vmatpush.msra.mxu0 %v964
  %1013 = vmatpush.msra.mxu0 %v963
  %1014 = vmatpush.msra.mxu0 %v962
  %1015 = vmatmul.f32.gmra.mxu0 %v988
  %v1016 = vpop.f32.mrf.mxu0
  %v1017 = vadd.f32 %v973, %v1016
  %1018 = vmatmul.f32.gmra.mxu0 %v991
  %v1019 = vpop.f32.mrf.mxu0
  %v1020 = vadd.f32 %v977, %v1019
  %1021 = vmatmul.f32.gmra.mxu0 %v994
  %v1022 = vpop.f32.mrf.mxu0
  %v1023 = vadd.f32 %v981, %v1022
  %1024 = vmatmul.f32.gmra.mxu0 %v997
  %v1025 = vpop.f32.mrf.mxu0
  %v1026 = vadd.f32 %v985, %v1025
  %1027 = vdwg.mxu0
  %v1028 = vadd.f32 %v417, %v1017
  %v1029 = vadd.f32 %v420, %v1020
  %v1030 = vadd.f32 %v423, %v1023
  %v1031 = vadd.f32 %v426, %v1026
  %1032 = vadd.xlane.f32.xlu0 %v1028
  %v1033 = vpop.xlane.xlu0 %1032
  %1034 = vadd.xlane.f32.xlu0 %v1029
  %v1035 = vpop.xlane.xlu0 %1034
  %1036 = vadd.xlane.f32.xlu0 %v1030
  %v1037 = vpop.xlane.xlu0 %1036
  %1038 = vadd.xlane.f32.xlu0 %v1031
  %v1039 = vpop.xlane.xlu0 %1038
  %v1040 = vmul.f32 %v1033, 0.0078125
  %v1041 = vmul.f32 %v1035, 0.0078125
  %v1042 = vmul.f32 %v1037, 0.0078125
  %v1043 = vmul.f32 %v1039, 0.0078125
  %v1044 = vmul.f32 %v1028, %v1028
  %v1045 = vmul.f32 %v1029, %v1029
  %v1046 = vmul.f32 %v1030, %v1030
  %v1047 = vmul.f32 %v1031, %v1031
  %1048 = vadd.xlane.f32.xlu0 %v1044
  %v1049 = vpop.xlane.xlu0 %1048
  %1050 = vadd.xlane.f32.xlu0 %v1045
  %v1051 = vpop.xlane.xlu0 %1050
  %1052 = vadd.xlane.f32.xlu0 %v1046
  %v1053 = vpop.xlane.xlu0 %1052
  %1054 = vadd.xlane.f32.xlu0 %v1047
  %v1055 = vpop.xlane.xlu0 %1054
  %v1056 = vmul.f32 %v1049, 0.0078125
  %v1057 = vmul.f32 %v1051, 0.0078125
  %v1058 = vmul.f32 %v1053, 0.0078125
  %v1059 = vmul.f32 %v1055, 0.0078125
  %v1060 = vmul.f32 %v1040, %v1040
  %v1061 = vmul.f32 %v1041, %v1041
  %v1062 = vmul.f32 %v1042, %v1042
  %v1063 = vmul.f32 %v1043, %v1043
  %v1064 = vsub.f32 %v1056, %v1060
  %v1065 = vsub.f32 %v1057, %v1061
  %v1066 = vsub.f32 %v1058, %v1062
  %v1067 = vsub.f32 %v1059, %v1063
  %v1068 = vadd.f32 %v1064, 1e-05
  %v1069 = vadd.f32 %v1065, 1e-05
  %v1070 = vadd.f32 %v1066, 1e-05
  %v1071 = vadd.f32 %v1067, 1e-05
  %v1072 = vrsqrt.pop %v1068
  %v1073 = vmul.f32 %v1072, %v1068
  %v1074 = vmul.f32 %v1073, %v1072
  %v1075 = vmul.f32 0.5, %v1074
  %v1076 = vsub.f32 1.5, %v1075
  %v1077 = vmul.f32 %v1072, %v1076
  %vm1078 = vweird.f32 %v1068
  %vm1079 = vweird.f32 %v1072
  %vm1080 = vmor %vm1078, %vm1079
  %v1081 = vsel %vm1080, %v1072, %v1077
  %v1082 = vrsqrt.pop %v1069
  %v1083 = vmul.f32 %v1082, %v1069
  %v1084 = vmul.f32 %v1083, %v1082
  %v1085 = vmul.f32 0.5, %v1084
  %v1086 = vsub.f32 1.5, %v1085
  %v1087 = vmul.f32 %v1082, %v1086
  %vm1088 = vweird.f32 %v1069
  %vm1089 = vweird.f32 %v1082
  %vm1090 = vmor %vm1088, %vm1089
  %v1091 = vsel %vm1090, %v1082, %v1087
  %v1092 = vrsqrt.pop %v1070
  %v1093 = vmul.f32 %v1092, %v1070
  %v1094 = vmul.f32 %v1093, %v1092
  %v1095 = vmul.f32 0.5, %v1094
  %v1096 = vsub.f32 1.5, %v1095
  %v1097 = vmul.f32 %v1092, %v1096
  %vm1098 = vweird.f32 %v1070
  %vm1099 = vweird.f32 %v1092
  %vm1100 = vmor %vm1098, %vm1099
  %v1101 = vsel %vm1100, %v1092, %v1097
  %v1102 = vrsqrt.pop %v1071
  %v1103 = vmul.f32 %v1102, %v1071
  %v1104 = vmul.f32 %v1103, %v1102
  %v1105 = vmul.f32 0.5, %v1104
  %v1106 = vsub.f32 1.5, %v1105
  %v1107 = vmul.f32 %v1102, %v1106
  %vm1108 = vweird.f32 %v1071
  %vm1109 = vweird.f32 %v1102
  %vm1110 = vmor %vm1108, %vm1109
  %v1111 = vsel %vm1110, %v1102, %v1107
  %v1112 = vmul.f32 %v477, %v1081
  %v1113 = vmul.f32 %v480, %v1091
  %v1114 = vmul.f32 %v483, %v1101
  %v1115 = vmul.f32 %v486, %v1111
  %v1116 = vmul.f32 %v1040, %v1112
  %v1117 = vmul.f32 %v1041, %v1113
  %v1118 = vmul.f32 %v1042, %v1114
  %v1119 = vmul.f32 %v1043, %v1115
  %v1120 = vsub.f32 %v489, %v1116
  %v1121 = vsub.f32 %v492, %v1117
  %v1122 = vsub.f32 %v495, %v1118
  %v1123 = vsub.f32 %v498, %v1119
  %v1124 = vmul.f32 %v1028, %v1112
  %v1125 = vmul.f32 %v1029, %v1113
  %v1126 = vmul.f32 %v1030, %v1114
  %v1127 = vmul.f32 %v1031, %v1115
  %v1128 = vadd.f32 %v1124, %v1120
  %v1129 = vadd.f32 %v1125, %v1121
  %v1130 = vadd.f32 %v1126, %v1122
  %v1131 = vadd.f32 %v1127, %v1123
  %v1132 = vmax.f32 %v1128, 0.0
  %v1133 = vmax.f32 %v1129, 0.0
  %v1134 = vmax.f32 %v1130, 0.0
  %v1135 = vmax.f32 %v1131, 0.0
  %s1136 = scalar_lea.vmem %s2, 64
  %v1137 = vld [vmem:[%s1136] sm:$0xff]
  %v1138 = vld [vmem:[%s1136 + $0x8] sm:$0xff]
  %v1139 = vld [vmem:[%s1136 + $0x10] sm:$0xff]
  %v1140 = vld [vmem:[%s1136 + $0x18] sm:$0xff]
  %1141 = vset.pattern.permute.xlu0 2
  %1142 = vperm.xlu0 %1141, %v17
  %v1143 = vpop.permute.xlu0 %1142
  %1145 = vset.pattern.permute.xlu0 2
  %1146 = vperm.xlu0 %1145, %v18
  %v1147 = vpop.permute.xlu0 %1146
  %1149 = vset.pattern.permute.xlu0 2
  %1150 = vperm.xlu0 %1149, %v19
  %v1151 = vpop.permute.xlu0 %1150
  %1153 = vset.pattern.permute.xlu0 2
  %1154 = vperm.xlu0 %1153, %v20
  %v1155 = vpop.permute.xlu0 %1154
  %v1158 = vsel %vm820, %v1137, 0
  %v1161 = vsel %vm820, %v1138, 0
  %v1164 = vsel %vm820, %v1139, 0
  %v1167 = vsel %vm820, %v1140, 0
  %1169 = vmatpush.msra.mxu0 0.0
  %1170 = vmatpush.msra.mxu0 0.0
  %1171 = vmatpush.msra.mxu0 0.0
  %1172 = vmatpush.msra.mxu0 0.0
  %1173 = vmatpush.msra.mxu0 0.0
  %1174 = vmatpush.msra.mxu0 0.0
  %1175 = vmatpush.msra.mxu0 0.0
  %1176 = vmatpush.msra.mxu0 0.0
  %1177 = vmatpush.msra.mxu0 0.0
  %1178 = vmatpush.msra.mxu0 0.0
  %1179 = vmatpush.msra.mxu0 0.0
  %1180 = vmatpush.msra.mxu0 0.0
  %1181 = vmatpush.msra.mxu0 %v1135
  %1182 = vmatpush.msra.mxu0 %v1134
  %1183 = vmatpush.msra.mxu0 %v1133
  %1184 = vmatpush.msra.mxu0 %v1132
  %1185 = vmatmul.f32.gmra.mxu0 %v1158
  %v1186 = vpop.f32.mrf.mxu0
  %v1187 = vadd.f32 %v1143, %v1186
  %1188 = vmatmul.f32.gmra.mxu0 %v1161
  %v1189 = vpop.f32.mrf.mxu0
  %v1190 = vadd.f32 %v1147, %v1189
  %1191 = vmatmul.f32.gmra.mxu0 %v1164
  %v1192 = vpop.f32.mrf.mxu0
  %v1193 = vadd.f32 %v1151, %v1192
  %1194 = vmatmul.f32.gmra.mxu0 %v1167
  %v1195 = vpop.f32.mrf.mxu0
  %v1196 = vadd.f32 %v1155, %v1195
  %1197 = vdwg.mxu0
  %1198 = vadd.xlane.f32.xlu0 %v1187
  %v1199 = vpop.xlane.xlu0 %1198
  %1200 = vadd.xlane.f32.xlu0 %v1190
  %v1201 = vpop.xlane.xlu0 %1200
  %1202 = vadd.xlane.f32.xlu0 %v1193
  %v1203 = vpop.xlane.xlu0 %1202
  %1204 = vadd.xlane.f32.xlu0 %v1196
  %v1205 = vpop.xlane.xlu0 %1204
  %v1206 = vmul.f32 %v1199, 0.0078125
  %v1207 = vmul.f32 %v1201, 0.0078125
  %v1208 = vmul.f32 %v1203, 0.0078125
  %v1209 = vmul.f32 %v1205, 0.0078125
  %v1210 = vmul.f32 %v1187, %v1187
  %v1211 = vmul.f32 %v1190, %v1190
  %v1212 = vmul.f32 %v1193, %v1193
  %v1213 = vmul.f32 %v1196, %v1196
  %1214 = vadd.xlane.f32.xlu0 %v1210
  %v1215 = vpop.xlane.xlu0 %1214
  %1216 = vadd.xlane.f32.xlu0 %v1211
  %v1217 = vpop.xlane.xlu0 %1216
  %1218 = vadd.xlane.f32.xlu0 %v1212
  %v1219 = vpop.xlane.xlu0 %1218
  %1220 = vadd.xlane.f32.xlu0 %v1213
  %v1221 = vpop.xlane.xlu0 %1220
  %v1222 = vmul.f32 %v1215, 0.0078125
  %v1223 = vmul.f32 %v1217, 0.0078125
  %v1224 = vmul.f32 %v1219, 0.0078125
  %v1225 = vmul.f32 %v1221, 0.0078125
  %v1226 = vmul.f32 %v1206, %v1206
  %v1227 = vmul.f32 %v1207, %v1207
  %v1228 = vmul.f32 %v1208, %v1208
  %v1229 = vmul.f32 %v1209, %v1209
  %v1230 = vsub.f32 %v1222, %v1226
  %v1231 = vsub.f32 %v1223, %v1227
  %v1232 = vsub.f32 %v1224, %v1228
  %v1233 = vsub.f32 %v1225, %v1229
  %v1234 = vadd.f32 %v1230, 1e-05
  %v1235 = vadd.f32 %v1231, 1e-05
  %v1236 = vadd.f32 %v1232, 1e-05
  %v1237 = vadd.f32 %v1233, 1e-05
  %v1238 = vrsqrt.pop %v1234
  %v1239 = vmul.f32 %v1238, %v1234
  %v1240 = vmul.f32 %v1239, %v1238
  %v1241 = vmul.f32 0.5, %v1240
  %v1242 = vsub.f32 1.5, %v1241
  %v1243 = vmul.f32 %v1238, %v1242
  %vm1244 = vweird.f32 %v1234
  %vm1245 = vweird.f32 %v1238
  %vm1246 = vmor %vm1244, %vm1245
  %v1247 = vsel %vm1246, %v1238, %v1243
  %v1248 = vrsqrt.pop %v1235
  %v1249 = vmul.f32 %v1248, %v1235
  %v1250 = vmul.f32 %v1249, %v1248
  %v1251 = vmul.f32 0.5, %v1250
  %v1252 = vsub.f32 1.5, %v1251
  %v1253 = vmul.f32 %v1248, %v1252
  %vm1254 = vweird.f32 %v1235
  %vm1255 = vweird.f32 %v1248
  %vm1256 = vmor %vm1254, %vm1255
  %v1257 = vsel %vm1256, %v1248, %v1253
  %v1258 = vrsqrt.pop %v1236
  %v1259 = vmul.f32 %v1258, %v1236
  %v1260 = vmul.f32 %v1259, %v1258
  %v1261 = vmul.f32 0.5, %v1260
  %v1262 = vsub.f32 1.5, %v1261
  %v1263 = vmul.f32 %v1258, %v1262
  %vm1264 = vweird.f32 %v1236
  %vm1265 = vweird.f32 %v1258
  %vm1266 = vmor %vm1264, %vm1265
  %v1267 = vsel %vm1266, %v1258, %v1263
  %v1268 = vrsqrt.pop %v1237
  %v1269 = vmul.f32 %v1268, %v1237
  %v1270 = vmul.f32 %v1269, %v1268
  %v1271 = vmul.f32 0.5, %v1270
  %v1272 = vsub.f32 1.5, %v1271
  %v1273 = vmul.f32 %v1268, %v1272
  %vm1274 = vweird.f32 %v1237
  %vm1275 = vweird.f32 %v1268
  %vm1276 = vmor %vm1274, %vm1275
  %v1277 = vsel %vm1276, %v1268, %v1273
  %v1278 = vmul.f32 %v501, %v1247
  %v1279 = vmul.f32 %v504, %v1257
  %v1280 = vmul.f32 %v507, %v1267
  %v1281 = vmul.f32 %v510, %v1277
  %v1282 = vmul.f32 %v1206, %v1278
  %v1283 = vmul.f32 %v1207, %v1279
  %v1284 = vmul.f32 %v1208, %v1280
  %v1285 = vmul.f32 %v1209, %v1281
  %v1286 = vsub.f32 %v513, %v1282
  %v1287 = vsub.f32 %v516, %v1283
  %v1288 = vsub.f32 %v519, %v1284
  %v1289 = vsub.f32 %v522, %v1285
  %v1290 = vmul.f32 %v1187, %v1278
  %v1291 = vmul.f32 %v1190, %v1279
  %v1292 = vmul.f32 %v1193, %v1280
  %v1293 = vmul.f32 %v1196, %v1281
  %v1294 = vadd.f32 %v1290, %v1286
  %v1295 = vadd.f32 %v1291, %v1287
  %v1296 = vadd.f32 %v1292, %v1288
  %v1297 = vadd.f32 %v1293, %v1289
  %v1298 = vmax.f32 %v1294, 0.0
  %v1299 = vmax.f32 %v1295, 0.0
  %v1300 = vmax.f32 %v1296, 0.0
  %v1301 = vmax.f32 %v1297, 0.0
  %s1302 = scalar_lea.vmem %s2, 96
  %v1303 = vld [vmem:[%s1302] sm:$0xff]
  %v1304 = vld [vmem:[%s1302 + $0x8] sm:$0xff]
  %v1305 = vld [vmem:[%s1302 + $0x10] sm:$0xff]
  %v1306 = vld [vmem:[%s1302 + $0x18] sm:$0xff]
  %1307 = vset.pattern.permute.xlu0 3
  %1308 = vperm.xlu0 %1307, %v17
  %v1309 = vpop.permute.xlu0 %1308
  %1311 = vset.pattern.permute.xlu0 3
  %1312 = vperm.xlu0 %1311, %v18
  %v1313 = vpop.permute.xlu0 %1312
  %1315 = vset.pattern.permute.xlu0 3
  %1316 = vperm.xlu0 %1315, %v19
  %v1317 = vpop.permute.xlu0 %1316
  %1319 = vset.pattern.permute.xlu0 3
  %1320 = vperm.xlu0 %1319, %v20
  %v1321 = vpop.permute.xlu0 %1320
  %v1324 = vsel %vm820, %v1303, 0
  %v1327 = vsel %vm820, %v1304, 0
  %v1330 = vsel %vm820, %v1305, 0
  %v1333 = vsel %vm820, %v1306, 0
  %1335 = vmatpush.msra.mxu0 0.0
  %1336 = vmatpush.msra.mxu0 0.0
  %1337 = vmatpush.msra.mxu0 0.0
  %1338 = vmatpush.msra.mxu0 0.0
  %1339 = vmatpush.msra.mxu0 0.0
  %1340 = vmatpush.msra.mxu0 0.0
  %1341 = vmatpush.msra.mxu0 0.0
  %1342 = vmatpush.msra.mxu0 0.0
  %1343 = vmatpush.msra.mxu0 0.0
  %1344 = vmatpush.msra.mxu0 0.0
  %1345 = vmatpush.msra.mxu0 0.0
  %1346 = vmatpush.msra.mxu0 0.0
  %1347 = vmatpush.msra.mxu0 %v1301
  %1348 = vmatpush.msra.mxu0 %v1300
  %1349 = vmatpush.msra.mxu0 %v1299
  %1350 = vmatpush.msra.mxu0 %v1298
  %1351 = vmatmul.f32.gmra.mxu0 %v1324
  %v1352 = vpop.f32.mrf.mxu0
  %v1353 = vadd.f32 %v1309, %v1352
  %1354 = vmatmul.f32.gmra.mxu0 %v1327
  %v1355 = vpop.f32.mrf.mxu0
  %v1356 = vadd.f32 %v1313, %v1355
  %1357 = vmatmul.f32.gmra.mxu0 %v1330
  %v1358 = vpop.f32.mrf.mxu0
  %v1359 = vadd.f32 %v1317, %v1358
  %1360 = vmatmul.f32.gmra.mxu0 %v1333
  %v1361 = vpop.f32.mrf.mxu0
  %v1362 = vadd.f32 %v1321, %v1361
  %1363 = vdwg.mxu0
  %v1364 = vadd.f32 %v1028, %v1353
  %v1365 = vadd.f32 %v1029, %v1356
  %v1366 = vadd.f32 %v1030, %v1359
  %v1367 = vadd.f32 %v1031, %v1362
  %1368 = vadd.xlane.f32.xlu0 %v1364
  %v1369 = vpop.xlane.xlu0 %1368
  %1370 = vadd.xlane.f32.xlu0 %v1365
  %v1371 = vpop.xlane.xlu0 %1370
  %1372 = vadd.xlane.f32.xlu0 %v1366
  %v1373 = vpop.xlane.xlu0 %1372
  %1374 = vadd.xlane.f32.xlu0 %v1367
  %v1375 = vpop.xlane.xlu0 %1374
  %v1376 = vmul.f32 %v1369, 0.0078125
  %v1377 = vmul.f32 %v1371, 0.0078125
  %v1378 = vmul.f32 %v1373, 0.0078125
  %v1379 = vmul.f32 %v1375, 0.0078125
  %v1380 = vmul.f32 %v1364, %v1364
  %v1381 = vmul.f32 %v1365, %v1365
  %v1382 = vmul.f32 %v1366, %v1366
  %v1383 = vmul.f32 %v1367, %v1367
  %1384 = vadd.xlane.f32.xlu0 %v1380
  %v1385 = vpop.xlane.xlu0 %1384
  %1386 = vadd.xlane.f32.xlu0 %v1381
  %v1387 = vpop.xlane.xlu0 %1386
  %1388 = vadd.xlane.f32.xlu0 %v1382
  %v1389 = vpop.xlane.xlu0 %1388
  %1390 = vadd.xlane.f32.xlu0 %v1383
  %v1391 = vpop.xlane.xlu0 %1390
  %v1392 = vmul.f32 %v1385, 0.0078125
  %v1393 = vmul.f32 %v1387, 0.0078125
  %v1394 = vmul.f32 %v1389, 0.0078125
  %v1395 = vmul.f32 %v1391, 0.0078125
  %v1396 = vmul.f32 %v1376, %v1376
  %v1397 = vmul.f32 %v1377, %v1377
  %v1398 = vmul.f32 %v1378, %v1378
  %v1399 = vmul.f32 %v1379, %v1379
  %v1400 = vsub.f32 %v1392, %v1396
  %v1401 = vsub.f32 %v1393, %v1397
  %v1402 = vsub.f32 %v1394, %v1398
  %v1403 = vsub.f32 %v1395, %v1399
  %v1404 = vadd.f32 %v1400, 1e-05
  %v1405 = vadd.f32 %v1401, 1e-05
  %v1406 = vadd.f32 %v1402, 1e-05
  %v1407 = vadd.f32 %v1403, 1e-05
  %v1408 = vrsqrt.pop %v1404
  %v1409 = vmul.f32 %v1408, %v1404
  %v1410 = vmul.f32 %v1409, %v1408
  %v1411 = vmul.f32 0.5, %v1410
  %v1412 = vsub.f32 1.5, %v1411
  %v1413 = vmul.f32 %v1408, %v1412
  %vm1414 = vweird.f32 %v1404
  %vm1415 = vweird.f32 %v1408
  %vm1416 = vmor %vm1414, %vm1415
  %v1417 = vsel %vm1416, %v1408, %v1413
  %v1418 = vrsqrt.pop %v1405
  %v1419 = vmul.f32 %v1418, %v1405
  %v1420 = vmul.f32 %v1419, %v1418
  %v1421 = vmul.f32 0.5, %v1420
  %v1422 = vsub.f32 1.5, %v1421
  %v1423 = vmul.f32 %v1418, %v1422
  %vm1424 = vweird.f32 %v1405
  %vm1425 = vweird.f32 %v1418
  %vm1426 = vmor %vm1424, %vm1425
  %v1427 = vsel %vm1426, %v1418, %v1423
  %v1428 = vrsqrt.pop %v1406
  %v1429 = vmul.f32 %v1428, %v1406
  %v1430 = vmul.f32 %v1429, %v1428
  %v1431 = vmul.f32 0.5, %v1430
  %v1432 = vsub.f32 1.5, %v1431
  %v1433 = vmul.f32 %v1428, %v1432
  %vm1434 = vweird.f32 %v1406
  %vm1435 = vweird.f32 %v1428
  %vm1436 = vmor %vm1434, %vm1435
  %v1437 = vsel %vm1436, %v1428, %v1433
  %v1438 = vrsqrt.pop %v1407
  %v1439 = vmul.f32 %v1438, %v1407
  %v1440 = vmul.f32 %v1439, %v1438
  %v1441 = vmul.f32 0.5, %v1440
  %v1442 = vsub.f32 1.5, %v1441
  %v1443 = vmul.f32 %v1438, %v1442
  %vm1444 = vweird.f32 %v1407
  %vm1445 = vweird.f32 %v1438
  %vm1446 = vmor %vm1444, %vm1445
  %v1447 = vsel %vm1446, %v1438, %v1443
  %v1448 = vmul.f32 %v525, %v1417
  %v1449 = vmul.f32 %v528, %v1427
  %v1450 = vmul.f32 %v531, %v1437
  %v1451 = vmul.f32 %v534, %v1447
  %v1452 = vmul.f32 %v1376, %v1448
  %v1453 = vmul.f32 %v1377, %v1449
  %v1454 = vmul.f32 %v1378, %v1450
  %v1455 = vmul.f32 %v1379, %v1451
  %v1456 = vsub.f32 %v537, %v1452
  %v1457 = vsub.f32 %v540, %v1453
  %v1458 = vsub.f32 %v543, %v1454
  %v1459 = vsub.f32 %v546, %v1455
  %v1460 = vmul.f32 %v1364, %v1448
  %v1461 = vmul.f32 %v1365, %v1449
  %v1462 = vmul.f32 %v1366, %v1450
  %v1463 = vmul.f32 %v1367, %v1451
  %v1464 = vadd.f32 %v1460, %v1456
  %v1465 = vadd.f32 %v1461, %v1457
  %v1466 = vadd.f32 %v1462, %v1458
  %v1467 = vadd.f32 %v1463, %v1459
  %v1468 = vmax.f32 %v1464, 0.0
  %v1469 = vmax.f32 %v1465, 0.0
  %v1470 = vmax.f32 %v1466, 0.0
  %v1471 = vmax.f32 %v1467, 0.0
  %s1472 = scalar_lea.vmem %s2, 128
  %v1473 = vld [vmem:[%s1472] sm:$0xff]
  %v1474 = vld [vmem:[%s1472 + $0x8] sm:$0xff]
  %v1475 = vld [vmem:[%s1472 + $0x10] sm:$0xff]
  %v1476 = vld [vmem:[%s1472 + $0x18] sm:$0xff]
  %1477 = vset.pattern.permute.xlu0 4
  %1478 = vperm.xlu0 %1477, %v17
  %v1479 = vpop.permute.xlu0 %1478
  %1481 = vset.pattern.permute.xlu0 4
  %1482 = vperm.xlu0 %1481, %v18
  %v1483 = vpop.permute.xlu0 %1482
  %1485 = vset.pattern.permute.xlu0 4
  %1486 = vperm.xlu0 %1485, %v19
  %v1487 = vpop.permute.xlu0 %1486
  %1489 = vset.pattern.permute.xlu0 4
  %1490 = vperm.xlu0 %1489, %v20
  %v1491 = vpop.permute.xlu0 %1490
  %v1494 = vsel %vm820, %v1473, 0
  %v1497 = vsel %vm820, %v1474, 0
  %v1500 = vsel %vm820, %v1475, 0
  %v1503 = vsel %vm820, %v1476, 0
  %1505 = vmatpush.msra.mxu0 0.0
  %1506 = vmatpush.msra.mxu0 0.0
  %1507 = vmatpush.msra.mxu0 0.0
  %1508 = vmatpush.msra.mxu0 0.0
  %1509 = vmatpush.msra.mxu0 0.0
  %1510 = vmatpush.msra.mxu0 0.0
  %1511 = vmatpush.msra.mxu0 0.0
  %1512 = vmatpush.msra.mxu0 0.0
  %1513 = vmatpush.msra.mxu0 0.0
  %1514 = vmatpush.msra.mxu0 0.0
  %1515 = vmatpush.msra.mxu0 0.0
  %1516 = vmatpush.msra.mxu0 0.0
  %1517 = vmatpush.msra.mxu0 %v1471
  %1518 = vmatpush.msra.mxu0 %v1470
  %1519 = vmatpush.msra.mxu0 %v1469
  %1520 = vmatpush.msra.mxu0 %v1468
  %1521 = vmatmul.f32.gmra.mxu0 %v1494
  %v1522 = vpop.f32.mrf.mxu0
  %v1523 = vadd.f32 %v1479, %v1522
  %1524 = vmatmul.f32.gmra.mxu0 %v1497
  %v1525 = vpop.f32.mrf.mxu0
  %v1526 = vadd.f32 %v1483, %v1525
  %1527 = vmatmul.f32.gmra.mxu0 %v1500
  %v1528 = vpop.f32.mrf.mxu0
  %v1529 = vadd.f32 %v1487, %v1528
  %1530 = vmatmul.f32.gmra.mxu0 %v1503
  %v1531 = vpop.f32.mrf.mxu0
  %v1532 = vadd.f32 %v1491, %v1531
  %1533 = vdwg.mxu0
  %1534 = vadd.xlane.f32.xlu0 %v1523
  %v1535 = vpop.xlane.xlu0 %1534
  %1536 = vadd.xlane.f32.xlu0 %v1526
  %v1537 = vpop.xlane.xlu0 %1536
  %1538 = vadd.xlane.f32.xlu0 %v1529
  %v1539 = vpop.xlane.xlu0 %1538
  %1540 = vadd.xlane.f32.xlu0 %v1532
  %v1541 = vpop.xlane.xlu0 %1540
  %v1542 = vmul.f32 %v1535, 0.0078125
  %v1543 = vmul.f32 %v1537, 0.0078125
  %v1544 = vmul.f32 %v1539, 0.0078125
  %v1545 = vmul.f32 %v1541, 0.0078125
  %v1546 = vmul.f32 %v1523, %v1523
  %v1547 = vmul.f32 %v1526, %v1526
  %v1548 = vmul.f32 %v1529, %v1529
  %v1549 = vmul.f32 %v1532, %v1532
  %1550 = vadd.xlane.f32.xlu0 %v1546
  %v1551 = vpop.xlane.xlu0 %1550
  %1552 = vadd.xlane.f32.xlu0 %v1547
  %v1553 = vpop.xlane.xlu0 %1552
  %1554 = vadd.xlane.f32.xlu0 %v1548
  %v1555 = vpop.xlane.xlu0 %1554
  %1556 = vadd.xlane.f32.xlu0 %v1549
  %v1557 = vpop.xlane.xlu0 %1556
  %v1558 = vmul.f32 %v1551, 0.0078125
  %v1559 = vmul.f32 %v1553, 0.0078125
  %v1560 = vmul.f32 %v1555, 0.0078125
  %v1561 = vmul.f32 %v1557, 0.0078125
  %v1562 = vmul.f32 %v1542, %v1542
  %v1563 = vmul.f32 %v1543, %v1543
  %v1564 = vmul.f32 %v1544, %v1544
  %v1565 = vmul.f32 %v1545, %v1545
  %v1566 = vsub.f32 %v1558, %v1562
  %v1567 = vsub.f32 %v1559, %v1563
  %v1568 = vsub.f32 %v1560, %v1564
  %v1569 = vsub.f32 %v1561, %v1565
  %v1570 = vadd.f32 %v1566, 1e-05
  %v1571 = vadd.f32 %v1567, 1e-05
  %v1572 = vadd.f32 %v1568, 1e-05
  %v1573 = vadd.f32 %v1569, 1e-05
  %v1574 = vrsqrt.pop %v1570
  %v1575 = vmul.f32 %v1574, %v1570
  %v1576 = vmul.f32 %v1575, %v1574
  %v1577 = vmul.f32 0.5, %v1576
  %v1578 = vsub.f32 1.5, %v1577
  %v1579 = vmul.f32 %v1574, %v1578
  %vm1580 = vweird.f32 %v1570
  %vm1581 = vweird.f32 %v1574
  %vm1582 = vmor %vm1580, %vm1581
  %v1583 = vsel %vm1582, %v1574, %v1579
  %v1584 = vrsqrt.pop %v1571
  %v1585 = vmul.f32 %v1584, %v1571
  %v1586 = vmul.f32 %v1585, %v1584
  %v1587 = vmul.f32 0.5, %v1586
  %v1588 = vsub.f32 1.5, %v1587
  %v1589 = vmul.f32 %v1584, %v1588
  %vm1590 = vweird.f32 %v1571
  %vm1591 = vweird.f32 %v1584
  %vm1592 = vmor %vm1590, %vm1591
  %v1593 = vsel %vm1592, %v1584, %v1589
  %v1594 = vrsqrt.pop %v1572
  %v1595 = vmul.f32 %v1594, %v1572
  %v1596 = vmul.f32 %v1595, %v1594
  %v1597 = vmul.f32 0.5, %v1596
  %v1598 = vsub.f32 1.5, %v1597
  %v1599 = vmul.f32 %v1594, %v1598
  %vm1600 = vweird.f32 %v1572
  %vm1601 = vweird.f32 %v1594
  %vm1602 = vmor %vm1600, %vm1601
  %v1603 = vsel %vm1602, %v1594, %v1599
  %v1604 = vrsqrt.pop %v1573
  %v1605 = vmul.f32 %v1604, %v1573
  %v1606 = vmul.f32 %v1605, %v1604
  %v1607 = vmul.f32 0.5, %v1606
  %v1608 = vsub.f32 1.5, %v1607
  %v1609 = vmul.f32 %v1604, %v1608
  %vm1610 = vweird.f32 %v1573
  %vm1611 = vweird.f32 %v1604
  %vm1612 = vmor %vm1610, %vm1611
  %v1613 = vsel %vm1612, %v1604, %v1609
  %v1614 = vmul.f32 %v549, %v1583
  %v1615 = vmul.f32 %v552, %v1593
  %v1616 = vmul.f32 %v555, %v1603
  %v1617 = vmul.f32 %v558, %v1613
  %v1618 = vmul.f32 %v1542, %v1614
  %v1619 = vmul.f32 %v1543, %v1615
  %v1620 = vmul.f32 %v1544, %v1616
  %v1621 = vmul.f32 %v1545, %v1617
  %v1622 = vsub.f32 %v561, %v1618
  %v1623 = vsub.f32 %v564, %v1619
  %v1624 = vsub.f32 %v567, %v1620
  %v1625 = vsub.f32 %v570, %v1621
  %v1626 = vmul.f32 %v1523, %v1614
  %v1627 = vmul.f32 %v1526, %v1615
  %v1628 = vmul.f32 %v1529, %v1616
  %v1629 = vmul.f32 %v1532, %v1617
  %v1630 = vadd.f32 %v1626, %v1622
  %v1631 = vadd.f32 %v1627, %v1623
  %v1632 = vadd.f32 %v1628, %v1624
  %v1633 = vadd.f32 %v1629, %v1625
  %v1634 = vmax.f32 %v1630, 0.0
  %v1635 = vmax.f32 %v1631, 0.0
  %v1636 = vmax.f32 %v1632, 0.0
  %v1637 = vmax.f32 %v1633, 0.0
  %s1638 = scalar_lea.vmem %s2, 160
  %v1639 = vld [vmem:[%s1638] sm:$0xff]
  %v1640 = vld [vmem:[%s1638 + $0x8] sm:$0xff]
  %v1641 = vld [vmem:[%s1638 + $0x10] sm:$0xff]
  %v1642 = vld [vmem:[%s1638 + $0x18] sm:$0xff]
  %1643 = vset.pattern.permute.xlu0 5
  %1644 = vperm.xlu0 %1643, %v17
  %v1645 = vpop.permute.xlu0 %1644
  %1647 = vset.pattern.permute.xlu0 5
  %1648 = vperm.xlu0 %1647, %v18
  %v1649 = vpop.permute.xlu0 %1648
  %1651 = vset.pattern.permute.xlu0 5
  %1652 = vperm.xlu0 %1651, %v19
  %v1653 = vpop.permute.xlu0 %1652
  %1655 = vset.pattern.permute.xlu0 5
  %1656 = vperm.xlu0 %1655, %v20
  %v1657 = vpop.permute.xlu0 %1656
  %v1660 = vsel %vm820, %v1639, 0
  %v1663 = vsel %vm820, %v1640, 0
  %v1666 = vsel %vm820, %v1641, 0
  %v1669 = vsel %vm820, %v1642, 0
  %1671 = vmatpush.msra.mxu0 0.0
  %1672 = vmatpush.msra.mxu0 0.0
  %1673 = vmatpush.msra.mxu0 0.0
  %1674 = vmatpush.msra.mxu0 0.0
  %1675 = vmatpush.msra.mxu0 0.0
  %1676 = vmatpush.msra.mxu0 0.0
  %1677 = vmatpush.msra.mxu0 0.0
  %1678 = vmatpush.msra.mxu0 0.0
  %1679 = vmatpush.msra.mxu0 0.0
  %1680 = vmatpush.msra.mxu0 0.0
  %1681 = vmatpush.msra.mxu0 0.0
  %1682 = vmatpush.msra.mxu0 0.0
  %1683 = vmatpush.msra.mxu0 %v1637
  %1684 = vmatpush.msra.mxu0 %v1636
  %1685 = vmatpush.msra.mxu0 %v1635
  %1686 = vmatpush.msra.mxu0 %v1634
  %1687 = vmatmul.f32.gmra.mxu0 %v1660
  %v1688 = vpop.f32.mrf.mxu0
  %v1689 = vadd.f32 %v1645, %v1688
  %1690 = vmatmul.f32.gmra.mxu0 %v1663
  %v1691 = vpop.f32.mrf.mxu0
  %v1692 = vadd.f32 %v1649, %v1691
  %1693 = vmatmul.f32.gmra.mxu0 %v1666
  %v1694 = vpop.f32.mrf.mxu0
  %v1695 = vadd.f32 %v1653, %v1694
  %1696 = vmatmul.f32.gmra.mxu0 %v1669
  %v1697 = vpop.f32.mrf.mxu0
  %v1698 = vadd.f32 %v1657, %v1697
  %1699 = vdwg.mxu0
  %v1700 = vadd.f32 %v1364, %v1689
  %v1701 = vadd.f32 %v1365, %v1692
  %v1702 = vadd.f32 %v1366, %v1695
  %v1703 = vadd.f32 %v1367, %v1698
  %1704 = vadd.xlane.f32.xlu0 %v1700
  %v1705 = vpop.xlane.xlu0 %1704
  %1706 = vadd.xlane.f32.xlu0 %v1701
  %v1707 = vpop.xlane.xlu0 %1706
  %1708 = vadd.xlane.f32.xlu0 %v1702
  %v1709 = vpop.xlane.xlu0 %1708
  %1710 = vadd.xlane.f32.xlu0 %v1703
  %v1711 = vpop.xlane.xlu0 %1710
  %v1712 = vmul.f32 %v1705, 0.0078125
  %v1713 = vmul.f32 %v1707, 0.0078125
  %v1714 = vmul.f32 %v1709, 0.0078125
  %v1715 = vmul.f32 %v1711, 0.0078125
  %v1716 = vmul.f32 %v1700, %v1700
  %v1717 = vmul.f32 %v1701, %v1701
  %v1718 = vmul.f32 %v1702, %v1702
  %v1719 = vmul.f32 %v1703, %v1703
  %1720 = vadd.xlane.f32.xlu0 %v1716
  %v1721 = vpop.xlane.xlu0 %1720
  %1722 = vadd.xlane.f32.xlu0 %v1717
  %v1723 = vpop.xlane.xlu0 %1722
  %1724 = vadd.xlane.f32.xlu0 %v1718
  %v1725 = vpop.xlane.xlu0 %1724
  %1726 = vadd.xlane.f32.xlu0 %v1719
  %v1727 = vpop.xlane.xlu0 %1726
  %v1728 = vmul.f32 %v1721, 0.0078125
  %v1729 = vmul.f32 %v1723, 0.0078125
  %v1730 = vmul.f32 %v1725, 0.0078125
  %v1731 = vmul.f32 %v1727, 0.0078125
  %v1732 = vmul.f32 %v1712, %v1712
  %v1733 = vmul.f32 %v1713, %v1713
  %v1734 = vmul.f32 %v1714, %v1714
  %v1735 = vmul.f32 %v1715, %v1715
  %v1736 = vsub.f32 %v1728, %v1732
  %v1737 = vsub.f32 %v1729, %v1733
  %v1738 = vsub.f32 %v1730, %v1734
  %v1739 = vsub.f32 %v1731, %v1735
  %v1740 = vadd.f32 %v1736, 1e-05
  %v1741 = vadd.f32 %v1737, 1e-05
  %v1742 = vadd.f32 %v1738, 1e-05
  %v1743 = vadd.f32 %v1739, 1e-05
  %v1744 = vrsqrt.pop %v1740
  %v1745 = vmul.f32 %v1744, %v1740
  %v1746 = vmul.f32 %v1745, %v1744
  %v1747 = vmul.f32 0.5, %v1746
  %v1748 = vsub.f32 1.5, %v1747
  %v1749 = vmul.f32 %v1744, %v1748
  %vm1750 = vweird.f32 %v1740
  %vm1751 = vweird.f32 %v1744
  %vm1752 = vmor %vm1750, %vm1751
  %v1753 = vsel %vm1752, %v1744, %v1749
  %v1754 = vrsqrt.pop %v1741
  %v1755 = vmul.f32 %v1754, %v1741
  %v1756 = vmul.f32 %v1755, %v1754
  %v1757 = vmul.f32 0.5, %v1756
  %v1758 = vsub.f32 1.5, %v1757
  %v1759 = vmul.f32 %v1754, %v1758
  %vm1760 = vweird.f32 %v1741
  %vm1761 = vweird.f32 %v1754
  %vm1762 = vmor %vm1760, %vm1761
  %v1763 = vsel %vm1762, %v1754, %v1759
  %v1764 = vrsqrt.pop %v1742
  %v1765 = vmul.f32 %v1764, %v1742
  %v1766 = vmul.f32 %v1765, %v1764
  %v1767 = vmul.f32 0.5, %v1766
  %v1768 = vsub.f32 1.5, %v1767
  %v1769 = vmul.f32 %v1764, %v1768
  %vm1770 = vweird.f32 %v1742
  %vm1771 = vweird.f32 %v1764
  %vm1772 = vmor %vm1770, %vm1771
  %v1773 = vsel %vm1772, %v1764, %v1769
  %v1774 = vrsqrt.pop %v1743
  %v1775 = vmul.f32 %v1774, %v1743
  %v1776 = vmul.f32 %v1775, %v1774
  %v1777 = vmul.f32 0.5, %v1776
  %v1778 = vsub.f32 1.5, %v1777
  %v1779 = vmul.f32 %v1774, %v1778
  %vm1780 = vweird.f32 %v1743
  %vm1781 = vweird.f32 %v1774
  %vm1782 = vmor %vm1780, %vm1781
  %v1783 = vsel %vm1782, %v1774, %v1779
  %v1784 = vmul.f32 %v573, %v1753
  %v1785 = vmul.f32 %v576, %v1763
  %v1786 = vmul.f32 %v579, %v1773
  %v1787 = vmul.f32 %v582, %v1783
  %v1788 = vmul.f32 %v1712, %v1784
  %v1789 = vmul.f32 %v1713, %v1785
  %v1790 = vmul.f32 %v1714, %v1786
  %v1791 = vmul.f32 %v1715, %v1787
  %v1792 = vsub.f32 %v585, %v1788
  %v1793 = vsub.f32 %v588, %v1789
  %v1794 = vsub.f32 %v591, %v1790
  %v1795 = vsub.f32 %v594, %v1791
  %v1796 = vmul.f32 %v1700, %v1784
  %v1797 = vmul.f32 %v1701, %v1785
  %v1798 = vmul.f32 %v1702, %v1786
  %v1799 = vmul.f32 %v1703, %v1787
  %v1800 = vadd.f32 %v1796, %v1792
  %v1801 = vadd.f32 %v1797, %v1793
  %v1802 = vadd.f32 %v1798, %v1794
  %v1803 = vadd.f32 %v1799, %v1795
  %v1804 = vmax.f32 %v1800, 0.0
  %v1805 = vmax.f32 %v1801, 0.0
  %v1806 = vmax.f32 %v1802, 0.0
  %v1807 = vmax.f32 %v1803, 0.0
  %s1808 = scalar_lea.vmem %s2, 192
  %v1809 = vld [vmem:[%s1808] sm:$0xff]
  %v1810 = vld [vmem:[%s1808 + $0x8] sm:$0xff]
  %v1811 = vld [vmem:[%s1808 + $0x10] sm:$0xff]
  %v1812 = vld [vmem:[%s1808 + $0x18] sm:$0xff]
  %1813 = vset.pattern.permute.xlu0 6
  %1814 = vperm.xlu0 %1813, %v17
  %v1815 = vpop.permute.xlu0 %1814
  %1817 = vset.pattern.permute.xlu0 6
  %1818 = vperm.xlu0 %1817, %v18
  %v1819 = vpop.permute.xlu0 %1818
  %1821 = vset.pattern.permute.xlu0 6
  %1822 = vperm.xlu0 %1821, %v19
  %v1823 = vpop.permute.xlu0 %1822
  %1825 = vset.pattern.permute.xlu0 6
  %1826 = vperm.xlu0 %1825, %v20
  %v1827 = vpop.permute.xlu0 %1826
  %v1830 = vsel %vm820, %v1809, 0
  %v1833 = vsel %vm820, %v1810, 0
  %v1836 = vsel %vm820, %v1811, 0
  %v1839 = vsel %vm820, %v1812, 0
  %1841 = vmatpush.msra.mxu0 0.0
  %1842 = vmatpush.msra.mxu0 0.0
  %1843 = vmatpush.msra.mxu0 0.0
  %1844 = vmatpush.msra.mxu0 0.0
  %1845 = vmatpush.msra.mxu0 0.0
  %1846 = vmatpush.msra.mxu0 0.0
  %1847 = vmatpush.msra.mxu0 0.0
  %1848 = vmatpush.msra.mxu0 0.0
  %1849 = vmatpush.msra.mxu0 0.0
  %1850 = vmatpush.msra.mxu0 0.0
  %1851 = vmatpush.msra.mxu0 0.0
  %1852 = vmatpush.msra.mxu0 0.0
  %1853 = vmatpush.msra.mxu0 %v1807
  %1854 = vmatpush.msra.mxu0 %v1806
  %1855 = vmatpush.msra.mxu0 %v1805
  %1856 = vmatpush.msra.mxu0 %v1804
  %1857 = vmatmul.f32.gmra.mxu0 %v1830
  %v1858 = vpop.f32.mrf.mxu0
  %v1859 = vadd.f32 %v1815, %v1858
  %1860 = vmatmul.f32.gmra.mxu0 %v1833
  %v1861 = vpop.f32.mrf.mxu0
  %v1862 = vadd.f32 %v1819, %v1861
  %1863 = vmatmul.f32.gmra.mxu0 %v1836
  %v1864 = vpop.f32.mrf.mxu0
  %v1865 = vadd.f32 %v1823, %v1864
  %1866 = vmatmul.f32.gmra.mxu0 %v1839
  %v1867 = vpop.f32.mrf.mxu0
  %v1868 = vadd.f32 %v1827, %v1867
  %1869 = vdwg.mxu0
  %1870 = vadd.xlane.f32.xlu0 %v1859
  %v1871 = vpop.xlane.xlu0 %1870
  %1872 = vadd.xlane.f32.xlu0 %v1862
  %v1873 = vpop.xlane.xlu0 %1872
  %1874 = vadd.xlane.f32.xlu0 %v1865
  %v1875 = vpop.xlane.xlu0 %1874
  %1876 = vadd.xlane.f32.xlu0 %v1868
  %v1877 = vpop.xlane.xlu0 %1876
  %v1878 = vmul.f32 %v1871, 0.0078125
  %v1879 = vmul.f32 %v1873, 0.0078125
  %v1880 = vmul.f32 %v1875, 0.0078125
  %v1881 = vmul.f32 %v1877, 0.0078125
  %v1882 = vmul.f32 %v1859, %v1859
  %v1883 = vmul.f32 %v1862, %v1862
  %v1884 = vmul.f32 %v1865, %v1865
  %v1885 = vmul.f32 %v1868, %v1868
  %1886 = vadd.xlane.f32.xlu0 %v1882
  %v1887 = vpop.xlane.xlu0 %1886
  %1888 = vadd.xlane.f32.xlu0 %v1883
  %v1889 = vpop.xlane.xlu0 %1888
  %1890 = vadd.xlane.f32.xlu0 %v1884
  %v1891 = vpop.xlane.xlu0 %1890
  %1892 = vadd.xlane.f32.xlu0 %v1885
  %v1893 = vpop.xlane.xlu0 %1892
  %v1894 = vmul.f32 %v1887, 0.0078125
  %v1895 = vmul.f32 %v1889, 0.0078125
  %v1896 = vmul.f32 %v1891, 0.0078125
  %v1897 = vmul.f32 %v1893, 0.0078125
  %v1898 = vmul.f32 %v1878, %v1878
  %v1899 = vmul.f32 %v1879, %v1879
  %v1900 = vmul.f32 %v1880, %v1880
  %v1901 = vmul.f32 %v1881, %v1881
  %v1902 = vsub.f32 %v1894, %v1898
  %v1903 = vsub.f32 %v1895, %v1899
  %v1904 = vsub.f32 %v1896, %v1900
  %v1905 = vsub.f32 %v1897, %v1901
  %v1906 = vadd.f32 %v1902, 1e-05
  %v1907 = vadd.f32 %v1903, 1e-05
  %v1908 = vadd.f32 %v1904, 1e-05
  %v1909 = vadd.f32 %v1905, 1e-05
  %v1910 = vrsqrt.pop %v1906
  %v1911 = vmul.f32 %v1910, %v1906
  %v1912 = vmul.f32 %v1911, %v1910
  %v1913 = vmul.f32 0.5, %v1912
  %v1914 = vsub.f32 1.5, %v1913
  %v1915 = vmul.f32 %v1910, %v1914
  %vm1916 = vweird.f32 %v1906
  %vm1917 = vweird.f32 %v1910
  %vm1918 = vmor %vm1916, %vm1917
  %v1919 = vsel %vm1918, %v1910, %v1915
  %v1920 = vrsqrt.pop %v1907
  %v1921 = vmul.f32 %v1920, %v1907
  %v1922 = vmul.f32 %v1921, %v1920
  %v1923 = vmul.f32 0.5, %v1922
  %v1924 = vsub.f32 1.5, %v1923
  %v1925 = vmul.f32 %v1920, %v1924
  %vm1926 = vweird.f32 %v1907
  %vm1927 = vweird.f32 %v1920
  %vm1928 = vmor %vm1926, %vm1927
  %v1929 = vsel %vm1928, %v1920, %v1925
  %v1930 = vrsqrt.pop %v1908
  %v1931 = vmul.f32 %v1930, %v1908
  %v1932 = vmul.f32 %v1931, %v1930
  %v1933 = vmul.f32 0.5, %v1932
  %v1934 = vsub.f32 1.5, %v1933
  %v1935 = vmul.f32 %v1930, %v1934
  %vm1936 = vweird.f32 %v1908
  %vm1937 = vweird.f32 %v1930
  %vm1938 = vmor %vm1936, %vm1937
  %v1939 = vsel %vm1938, %v1930, %v1935
  %v1940 = vrsqrt.pop %v1909
  %v1941 = vmul.f32 %v1940, %v1909
  %v1942 = vmul.f32 %v1941, %v1940
  %v1943 = vmul.f32 0.5, %v1942
  %v1944 = vsub.f32 1.5, %v1943
  %v1945 = vmul.f32 %v1940, %v1944
  %vm1946 = vweird.f32 %v1909
  %vm1947 = vweird.f32 %v1940
  %vm1948 = vmor %vm1946, %vm1947
  %v1949 = vsel %vm1948, %v1940, %v1945
  %v1950 = vmul.f32 %v597, %v1919
  %v1951 = vmul.f32 %v600, %v1929
  %v1952 = vmul.f32 %v603, %v1939
  %v1953 = vmul.f32 %v606, %v1949
  %v1954 = vmul.f32 %v1878, %v1950
  %v1955 = vmul.f32 %v1879, %v1951
  %v1956 = vmul.f32 %v1880, %v1952
  %v1957 = vmul.f32 %v1881, %v1953
  %v1958 = vsub.f32 %v609, %v1954
  %v1959 = vsub.f32 %v612, %v1955
  %v1960 = vsub.f32 %v615, %v1956
  %v1961 = vsub.f32 %v618, %v1957
  %v1962 = vmul.f32 %v1859, %v1950
  %v1963 = vmul.f32 %v1862, %v1951
  %v1964 = vmul.f32 %v1865, %v1952
  %v1965 = vmul.f32 %v1868, %v1953
  %v1966 = vadd.f32 %v1962, %v1958
  %v1967 = vadd.f32 %v1963, %v1959
  %v1968 = vadd.f32 %v1964, %v1960
  %v1969 = vadd.f32 %v1965, %v1961
  %v1970 = vmax.f32 %v1966, 0.0
  %v1971 = vmax.f32 %v1967, 0.0
  %v1972 = vmax.f32 %v1968, 0.0
  %v1973 = vmax.f32 %v1969, 0.0
  %s1974 = scalar_lea.vmem %s2, 224
  %v1975 = vld [vmem:[%s1974] sm:$0xff]
  %v1976 = vld [vmem:[%s1974 + $0x8] sm:$0xff]
  %v1977 = vld [vmem:[%s1974 + $0x10] sm:$0xff]
  %v1978 = vld [vmem:[%s1974 + $0x18] sm:$0xff]
  %1979 = vset.pattern.permute.xlu0 7
  %1980 = vperm.xlu0 %1979, %v17
  %v1981 = vpop.permute.xlu0 %1980
  %1983 = vset.pattern.permute.xlu0 7
  %1984 = vperm.xlu0 %1983, %v18
  %v1985 = vpop.permute.xlu0 %1984
  %1987 = vset.pattern.permute.xlu0 7
  %1988 = vperm.xlu0 %1987, %v19
  %v1989 = vpop.permute.xlu0 %1988
  %1991 = vset.pattern.permute.xlu0 7
  %1992 = vperm.xlu0 %1991, %v20
  %v1993 = vpop.permute.xlu0 %1992
  %v1996 = vsel %vm820, %v1975, 0
  %v1999 = vsel %vm820, %v1976, 0
  %v2002 = vsel %vm820, %v1977, 0
  %v2005 = vsel %vm820, %v1978, 0
  %2007 = vmatpush.msra.mxu0 0.0
  %2008 = vmatpush.msra.mxu0 0.0
  %2009 = vmatpush.msra.mxu0 0.0
  %2010 = vmatpush.msra.mxu0 0.0
  %2011 = vmatpush.msra.mxu0 0.0
  %2012 = vmatpush.msra.mxu0 0.0
  %2013 = vmatpush.msra.mxu0 0.0
  %2014 = vmatpush.msra.mxu0 0.0
  %2015 = vmatpush.msra.mxu0 0.0
  %2016 = vmatpush.msra.mxu0 0.0
  %2017 = vmatpush.msra.mxu0 0.0
  %2018 = vmatpush.msra.mxu0 0.0
  %2019 = vmatpush.msra.mxu0 %v1973
  %2020 = vmatpush.msra.mxu0 %v1972
  %2021 = vmatpush.msra.mxu0 %v1971
  %2022 = vmatpush.msra.mxu0 %v1970
  %2023 = vmatmul.f32.gmra.mxu0 %v1996
  %v2024 = vpop.f32.mrf.mxu0
  %v2025 = vadd.f32 %v1981, %v2024
  %2026 = vmatmul.f32.gmra.mxu0 %v1999
  %v2027 = vpop.f32.mrf.mxu0
  %v2028 = vadd.f32 %v1985, %v2027
  %2029 = vmatmul.f32.gmra.mxu0 %v2002
  %v2030 = vpop.f32.mrf.mxu0
  %v2031 = vadd.f32 %v1989, %v2030
  %2032 = vmatmul.f32.gmra.mxu0 %v2005
  %v2033 = vpop.f32.mrf.mxu0
  %v2034 = vadd.f32 %v1993, %v2033
  %2035 = vdwg.mxu0
  %v2036 = vadd.f32 %v1700, %v2025
  %v2037 = vadd.f32 %v1701, %v2028
  %v2038 = vadd.f32 %v1702, %v2031
  %v2039 = vadd.f32 %v1703, %v2034
  %2040 = vadd.xlane.f32.xlu0 %v2036
  %v2041 = vpop.xlane.xlu0 %2040
  %2042 = vadd.xlane.f32.xlu0 %v2037
  %v2043 = vpop.xlane.xlu0 %2042
  %2044 = vadd.xlane.f32.xlu0 %v2038
  %v2045 = vpop.xlane.xlu0 %2044
  %2046 = vadd.xlane.f32.xlu0 %v2039
  %v2047 = vpop.xlane.xlu0 %2046
  %v2048 = vmul.f32 %v2041, 0.0078125
  %v2049 = vmul.f32 %v2043, 0.0078125
  %v2050 = vmul.f32 %v2045, 0.0078125
  %v2051 = vmul.f32 %v2047, 0.0078125
  %v2052 = vmul.f32 %v2036, %v2036
  %v2053 = vmul.f32 %v2037, %v2037
  %v2054 = vmul.f32 %v2038, %v2038
  %v2055 = vmul.f32 %v2039, %v2039
  %2056 = vadd.xlane.f32.xlu0 %v2052
  %v2057 = vpop.xlane.xlu0 %2056
  %2058 = vadd.xlane.f32.xlu0 %v2053
  %v2059 = vpop.xlane.xlu0 %2058
  %2060 = vadd.xlane.f32.xlu0 %v2054
  %v2061 = vpop.xlane.xlu0 %2060
  %2062 = vadd.xlane.f32.xlu0 %v2055
  %v2063 = vpop.xlane.xlu0 %2062
  %v2064 = vmul.f32 %v2057, 0.0078125
  %v2065 = vmul.f32 %v2059, 0.0078125
  %v2066 = vmul.f32 %v2061, 0.0078125
  %v2067 = vmul.f32 %v2063, 0.0078125
  %v2068 = vmul.f32 %v2048, %v2048
  %v2069 = vmul.f32 %v2049, %v2049
  %v2070 = vmul.f32 %v2050, %v2050
  %v2071 = vmul.f32 %v2051, %v2051
  %v2072 = vsub.f32 %v2064, %v2068
  %v2073 = vsub.f32 %v2065, %v2069
  %v2074 = vsub.f32 %v2066, %v2070
  %v2075 = vsub.f32 %v2067, %v2071
  %v2076 = vadd.f32 %v2072, 1e-05
  %v2077 = vadd.f32 %v2073, 1e-05
  %v2078 = vadd.f32 %v2074, 1e-05
  %v2079 = vadd.f32 %v2075, 1e-05
  %v2080 = vrsqrt.pop %v2076
  %v2081 = vmul.f32 %v2080, %v2076
  %v2082 = vmul.f32 %v2081, %v2080
  %v2083 = vmul.f32 0.5, %v2082
  %v2084 = vsub.f32 1.5, %v2083
  %v2085 = vmul.f32 %v2080, %v2084
  %vm2086 = vweird.f32 %v2076
  %vm2087 = vweird.f32 %v2080
  %vm2088 = vmor %vm2086, %vm2087
  %v2089 = vsel %vm2088, %v2080, %v2085
  %v2090 = vrsqrt.pop %v2077
  %v2091 = vmul.f32 %v2090, %v2077
  %v2092 = vmul.f32 %v2091, %v2090
  %v2093 = vmul.f32 0.5, %v2092
  %v2094 = vsub.f32 1.5, %v2093
  %v2095 = vmul.f32 %v2090, %v2094
  %vm2096 = vweird.f32 %v2077
  %vm2097 = vweird.f32 %v2090
  %vm2098 = vmor %vm2096, %vm2097
  %v2099 = vsel %vm2098, %v2090, %v2095
  %v2100 = vrsqrt.pop %v2078
  %v2101 = vmul.f32 %v2100, %v2078
  %v2102 = vmul.f32 %v2101, %v2100
  %v2103 = vmul.f32 0.5, %v2102
  %v2104 = vsub.f32 1.5, %v2103
  %v2105 = vmul.f32 %v2100, %v2104
  %vm2106 = vweird.f32 %v2078
  %vm2107 = vweird.f32 %v2100
  %vm2108 = vmor %vm2106, %vm2107
  %v2109 = vsel %vm2108, %v2100, %v2105
  %v2110 = vrsqrt.pop %v2079
  %v2111 = vmul.f32 %v2110, %v2079
  %v2112 = vmul.f32 %v2111, %v2110
  %v2113 = vmul.f32 0.5, %v2112
  %v2114 = vsub.f32 1.5, %v2113
  %v2115 = vmul.f32 %v2110, %v2114
  %vm2116 = vweird.f32 %v2079
  %vm2117 = vweird.f32 %v2110
  %vm2118 = vmor %vm2116, %vm2117
  %v2119 = vsel %vm2118, %v2110, %v2115
  %v2120 = vmul.f32 %v621, %v2089
  %v2121 = vmul.f32 %v624, %v2099
  %v2122 = vmul.f32 %v627, %v2109
  %v2123 = vmul.f32 %v630, %v2119
  %v2124 = vmul.f32 %v2048, %v2120
  %v2125 = vmul.f32 %v2049, %v2121
  %v2126 = vmul.f32 %v2050, %v2122
  %v2127 = vmul.f32 %v2051, %v2123
  %v2128 = vsub.f32 %v633, %v2124
  %v2129 = vsub.f32 %v636, %v2125
  %v2130 = vsub.f32 %v639, %v2126
  %v2131 = vsub.f32 %v642, %v2127
  %v2132 = vmul.f32 %v2036, %v2120
  %v2133 = vmul.f32 %v2037, %v2121
  %v2134 = vmul.f32 %v2038, %v2122
  %v2135 = vmul.f32 %v2039, %v2123
  %v2136 = vadd.f32 %v2132, %v2128
  %v2137 = vadd.f32 %v2133, %v2129
  %v2138 = vadd.f32 %v2134, %v2130
  %v2139 = vadd.f32 %v2135, %v2131
  %v2140 = vmax.f32 %v2136, 0.0
  %v2141 = vmax.f32 %v2137, 0.0
  %v2142 = vmax.f32 %v2138, 0.0
  %v2143 = vmax.f32 %v2139, 0.0
  %s2144 = scalar_lea.vmem %s2, 256
  %v2145 = vld [vmem:[%s2144] sm:$0xff]
  %v2146 = vld [vmem:[%s2144 + $0x8] sm:$0xff]
  %v2147 = vld [vmem:[%s2144 + $0x10] sm:$0xff]
  %v2148 = vld [vmem:[%s2144 + $0x18] sm:$0xff]
  %2149 = vset.pattern.permute.xlu0 8
  %2150 = vperm.xlu0 %2149, %v17
  %v2151 = vpop.permute.xlu0 %2150
  %2153 = vset.pattern.permute.xlu0 8
  %2154 = vperm.xlu0 %2153, %v18
  %v2155 = vpop.permute.xlu0 %2154
  %2157 = vset.pattern.permute.xlu0 8
  %2158 = vperm.xlu0 %2157, %v19
  %v2159 = vpop.permute.xlu0 %2158
  %2161 = vset.pattern.permute.xlu0 8
  %2162 = vperm.xlu0 %2161, %v20
  %v2163 = vpop.permute.xlu0 %2162
  %v2166 = vsel %vm820, %v2145, 0
  %v2169 = vsel %vm820, %v2146, 0
  %v2172 = vsel %vm820, %v2147, 0
  %v2175 = vsel %vm820, %v2148, 0
  %2177 = vmatpush.msra.mxu0 0.0
  %2178 = vmatpush.msra.mxu0 0.0
  %2179 = vmatpush.msra.mxu0 0.0
  %2180 = vmatpush.msra.mxu0 0.0
  %2181 = vmatpush.msra.mxu0 0.0
  %2182 = vmatpush.msra.mxu0 0.0
  %2183 = vmatpush.msra.mxu0 0.0
  %2184 = vmatpush.msra.mxu0 0.0
  %2185 = vmatpush.msra.mxu0 0.0
  %2186 = vmatpush.msra.mxu0 0.0
  %2187 = vmatpush.msra.mxu0 0.0
  %2188 = vmatpush.msra.mxu0 0.0
  %2189 = vmatpush.msra.mxu0 %v2143
  %2190 = vmatpush.msra.mxu0 %v2142
  %2191 = vmatpush.msra.mxu0 %v2141
  %2192 = vmatpush.msra.mxu0 %v2140
  %2193 = vmatmul.f32.gmra.mxu0 %v2166
  %v2194 = vpop.f32.mrf.mxu0
  %v2195 = vadd.f32 %v2151, %v2194
  %2196 = vmatmul.f32.gmra.mxu0 %v2169
  %v2197 = vpop.f32.mrf.mxu0
  %v2198 = vadd.f32 %v2155, %v2197
  %2199 = vmatmul.f32.gmra.mxu0 %v2172
  %v2200 = vpop.f32.mrf.mxu0
  %v2201 = vadd.f32 %v2159, %v2200
  %2202 = vmatmul.f32.gmra.mxu0 %v2175
  %v2203 = vpop.f32.mrf.mxu0
  %v2204 = vadd.f32 %v2163, %v2203
  %2205 = vdwg.mxu0
  %2206 = vadd.xlane.f32.xlu0 %v2195
  %v2207 = vpop.xlane.xlu0 %2206
  %2208 = vadd.xlane.f32.xlu0 %v2198
  %v2209 = vpop.xlane.xlu0 %2208
  %2210 = vadd.xlane.f32.xlu0 %v2201
  %v2211 = vpop.xlane.xlu0 %2210
  %2212 = vadd.xlane.f32.xlu0 %v2204
  %v2213 = vpop.xlane.xlu0 %2212
  %v2214 = vmul.f32 %v2207, 0.0078125
  %v2215 = vmul.f32 %v2209, 0.0078125
  %v2216 = vmul.f32 %v2211, 0.0078125
  %v2217 = vmul.f32 %v2213, 0.0078125
  %v2218 = vmul.f32 %v2195, %v2195
  %v2219 = vmul.f32 %v2198, %v2198
  %v2220 = vmul.f32 %v2201, %v2201
  %v2221 = vmul.f32 %v2204, %v2204
  %2222 = vadd.xlane.f32.xlu0 %v2218
  %v2223 = vpop.xlane.xlu0 %2222
  %2224 = vadd.xlane.f32.xlu0 %v2219
  %v2225 = vpop.xlane.xlu0 %2224
  %2226 = vadd.xlane.f32.xlu0 %v2220
  %v2227 = vpop.xlane.xlu0 %2226
  %2228 = vadd.xlane.f32.xlu0 %v2221
  %v2229 = vpop.xlane.xlu0 %2228
  %v2230 = vmul.f32 %v2223, 0.0078125
  %v2231 = vmul.f32 %v2225, 0.0078125
  %v2232 = vmul.f32 %v2227, 0.0078125
  %v2233 = vmul.f32 %v2229, 0.0078125
  %v2234 = vmul.f32 %v2214, %v2214
  %v2235 = vmul.f32 %v2215, %v2215
  %v2236 = vmul.f32 %v2216, %v2216
  %v2237 = vmul.f32 %v2217, %v2217
  %v2238 = vsub.f32 %v2230, %v2234
  %v2239 = vsub.f32 %v2231, %v2235
  %v2240 = vsub.f32 %v2232, %v2236
  %v2241 = vsub.f32 %v2233, %v2237
  %v2242 = vadd.f32 %v2238, 1e-05
  %v2243 = vadd.f32 %v2239, 1e-05
  %v2244 = vadd.f32 %v2240, 1e-05
  %v2245 = vadd.f32 %v2241, 1e-05
  %v2246 = vrsqrt.pop %v2242
  %v2247 = vmul.f32 %v2246, %v2242
  %v2248 = vmul.f32 %v2247, %v2246
  %v2249 = vmul.f32 0.5, %v2248
  %v2250 = vsub.f32 1.5, %v2249
  %v2251 = vmul.f32 %v2246, %v2250
  %vm2252 = vweird.f32 %v2242
  %vm2253 = vweird.f32 %v2246
  %vm2254 = vmor %vm2252, %vm2253
  %v2255 = vsel %vm2254, %v2246, %v2251
  %v2256 = vrsqrt.pop %v2243
  %v2257 = vmul.f32 %v2256, %v2243
  %v2258 = vmul.f32 %v2257, %v2256
  %v2259 = vmul.f32 0.5, %v2258
  %v2260 = vsub.f32 1.5, %v2259
  %v2261 = vmul.f32 %v2256, %v2260
  %vm2262 = vweird.f32 %v2243
  %vm2263 = vweird.f32 %v2256
  %vm2264 = vmor %vm2262, %vm2263
  %v2265 = vsel %vm2264, %v2256, %v2261
  %v2266 = vrsqrt.pop %v2244
  %v2267 = vmul.f32 %v2266, %v2244
  %v2268 = vmul.f32 %v2267, %v2266
  %v2269 = vmul.f32 0.5, %v2268
  %v2270 = vsub.f32 1.5, %v2269
  %v2271 = vmul.f32 %v2266, %v2270
  %vm2272 = vweird.f32 %v2244
  %vm2273 = vweird.f32 %v2266
  %vm2274 = vmor %vm2272, %vm2273
  %v2275 = vsel %vm2274, %v2266, %v2271
  %v2276 = vrsqrt.pop %v2245
  %v2277 = vmul.f32 %v2276, %v2245
  %v2278 = vmul.f32 %v2277, %v2276
  %v2279 = vmul.f32 0.5, %v2278
  %v2280 = vsub.f32 1.5, %v2279
  %v2281 = vmul.f32 %v2276, %v2280
  %vm2282 = vweird.f32 %v2245
  %vm2283 = vweird.f32 %v2276
  %vm2284 = vmor %vm2282, %vm2283
  %v2285 = vsel %vm2284, %v2276, %v2281
  %v2286 = vmul.f32 %v645, %v2255
  %v2287 = vmul.f32 %v648, %v2265
  %v2288 = vmul.f32 %v651, %v2275
  %v2289 = vmul.f32 %v654, %v2285
  %v2290 = vmul.f32 %v2214, %v2286
  %v2291 = vmul.f32 %v2215, %v2287
  %v2292 = vmul.f32 %v2216, %v2288
  %v2293 = vmul.f32 %v2217, %v2289
  %v2294 = vsub.f32 %v657, %v2290
  %v2295 = vsub.f32 %v660, %v2291
  %v2296 = vsub.f32 %v663, %v2292
  %v2297 = vsub.f32 %v666, %v2293
  %v2298 = vmul.f32 %v2195, %v2286
  %v2299 = vmul.f32 %v2198, %v2287
  %v2300 = vmul.f32 %v2201, %v2288
  %v2301 = vmul.f32 %v2204, %v2289
  %v2302 = vadd.f32 %v2298, %v2294
  %v2303 = vadd.f32 %v2299, %v2295
  %v2304 = vadd.f32 %v2300, %v2296
  %v2305 = vadd.f32 %v2301, %v2297
  %v2306 = vmax.f32 %v2302, 0.0
  %v2307 = vmax.f32 %v2303, 0.0
  %v2308 = vmax.f32 %v2304, 0.0
  %v2309 = vmax.f32 %v2305, 0.0
  %s2310 = scalar_lea.vmem %s2, 288
  %v2311 = vld [vmem:[%s2310] sm:$0xff]
  %v2312 = vld [vmem:[%s2310 + $0x8] sm:$0xff]
  %v2313 = vld [vmem:[%s2310 + $0x10] sm:$0xff]
  %v2314 = vld [vmem:[%s2310 + $0x18] sm:$0xff]
  %2315 = vset.pattern.permute.xlu0 9
  %2316 = vperm.xlu0 %2315, %v17
  %v2317 = vpop.permute.xlu0 %2316
  %2319 = vset.pattern.permute.xlu0 9
  %2320 = vperm.xlu0 %2319, %v18
  %v2321 = vpop.permute.xlu0 %2320
  %2323 = vset.pattern.permute.xlu0 9
  %2324 = vperm.xlu0 %2323, %v19
  %v2325 = vpop.permute.xlu0 %2324
  %2327 = vset.pattern.permute.xlu0 9
  %2328 = vperm.xlu0 %2327, %v20
  %v2329 = vpop.permute.xlu0 %2328
  %v2332 = vsel %vm820, %v2311, 0
  %v2335 = vsel %vm820, %v2312, 0
  %v2338 = vsel %vm820, %v2313, 0
  %v2341 = vsel %vm820, %v2314, 0
  %2343 = vmatpush.msra.mxu0 0.0
  %2344 = vmatpush.msra.mxu0 0.0
  %2345 = vmatpush.msra.mxu0 0.0
  %2346 = vmatpush.msra.mxu0 0.0
  %2347 = vmatpush.msra.mxu0 0.0
  %2348 = vmatpush.msra.mxu0 0.0
  %2349 = vmatpush.msra.mxu0 0.0
  %2350 = vmatpush.msra.mxu0 0.0
  %2351 = vmatpush.msra.mxu0 0.0
  %2352 = vmatpush.msra.mxu0 0.0
  %2353 = vmatpush.msra.mxu0 0.0
  %2354 = vmatpush.msra.mxu0 0.0
  %2355 = vmatpush.msra.mxu0 %v2309
  %2356 = vmatpush.msra.mxu0 %v2308
  %2357 = vmatpush.msra.mxu0 %v2307
  %2358 = vmatpush.msra.mxu0 %v2306
  %2359 = vmatmul.f32.gmra.mxu0 %v2332
  %v2360 = vpop.f32.mrf.mxu0
  %v2361 = vadd.f32 %v2317, %v2360
  %2362 = vmatmul.f32.gmra.mxu0 %v2335
  %v2363 = vpop.f32.mrf.mxu0
  %v2364 = vadd.f32 %v2321, %v2363
  %2365 = vmatmul.f32.gmra.mxu0 %v2338
  %v2366 = vpop.f32.mrf.mxu0
  %v2367 = vadd.f32 %v2325, %v2366
  %2368 = vmatmul.f32.gmra.mxu0 %v2341
  %v2369 = vpop.f32.mrf.mxu0
  %v2370 = vadd.f32 %v2329, %v2369
  %2371 = vdwg.mxu0
  %v2372 = vadd.f32 %v2036, %v2361
  %v2373 = vadd.f32 %v2037, %v2364
  %v2374 = vadd.f32 %v2038, %v2367
  %v2375 = vadd.f32 %v2039, %v2370
  %2376 = vadd.xlane.f32.xlu0 %v2372
  %v2377 = vpop.xlane.xlu0 %2376
  %2378 = vadd.xlane.f32.xlu0 %v2373
  %v2379 = vpop.xlane.xlu0 %2378
  %2380 = vadd.xlane.f32.xlu0 %v2374
  %v2381 = vpop.xlane.xlu0 %2380
  %2382 = vadd.xlane.f32.xlu0 %v2375
  %v2383 = vpop.xlane.xlu0 %2382
  %v2384 = vmul.f32 %v2377, 0.0078125
  %v2385 = vmul.f32 %v2379, 0.0078125
  %v2386 = vmul.f32 %v2381, 0.0078125
  %v2387 = vmul.f32 %v2383, 0.0078125
  %v2388 = vmul.f32 %v2372, %v2372
  %v2389 = vmul.f32 %v2373, %v2373
  %v2390 = vmul.f32 %v2374, %v2374
  %v2391 = vmul.f32 %v2375, %v2375
  %2392 = vadd.xlane.f32.xlu0 %v2388
  %v2393 = vpop.xlane.xlu0 %2392
  %2394 = vadd.xlane.f32.xlu0 %v2389
  %v2395 = vpop.xlane.xlu0 %2394
  %2396 = vadd.xlane.f32.xlu0 %v2390
  %v2397 = vpop.xlane.xlu0 %2396
  %2398 = vadd.xlane.f32.xlu0 %v2391
  %v2399 = vpop.xlane.xlu0 %2398
  %v2400 = vmul.f32 %v2393, 0.0078125
  %v2401 = vmul.f32 %v2395, 0.0078125
  %v2402 = vmul.f32 %v2397, 0.0078125
  %v2403 = vmul.f32 %v2399, 0.0078125
  %v2404 = vmul.f32 %v2384, %v2384
  %v2405 = vmul.f32 %v2385, %v2385
  %v2406 = vmul.f32 %v2386, %v2386
  %v2407 = vmul.f32 %v2387, %v2387
  %v2408 = vsub.f32 %v2400, %v2404
  %v2409 = vsub.f32 %v2401, %v2405
  %v2410 = vsub.f32 %v2402, %v2406
  %v2411 = vsub.f32 %v2403, %v2407
  %v2412 = vadd.f32 %v2408, 1e-05
  %v2413 = vadd.f32 %v2409, 1e-05
  %v2414 = vadd.f32 %v2410, 1e-05
  %v2415 = vadd.f32 %v2411, 1e-05
  %v2416 = vrsqrt.pop %v2412
  %v2417 = vmul.f32 %v2416, %v2412
  %v2418 = vmul.f32 %v2417, %v2416
  %v2419 = vmul.f32 0.5, %v2418
  %v2420 = vsub.f32 1.5, %v2419
  %v2421 = vmul.f32 %v2416, %v2420
  %vm2422 = vweird.f32 %v2412
  %vm2423 = vweird.f32 %v2416
  %vm2424 = vmor %vm2422, %vm2423
  %v2425 = vsel %vm2424, %v2416, %v2421
  %v2426 = vrsqrt.pop %v2413
  %v2427 = vmul.f32 %v2426, %v2413
  %v2428 = vmul.f32 %v2427, %v2426
  %v2429 = vmul.f32 0.5, %v2428
  %v2430 = vsub.f32 1.5, %v2429
  %v2431 = vmul.f32 %v2426, %v2430
  %vm2432 = vweird.f32 %v2413
  %vm2433 = vweird.f32 %v2426
  %vm2434 = vmor %vm2432, %vm2433
  %v2435 = vsel %vm2434, %v2426, %v2431
  %v2436 = vrsqrt.pop %v2414
  %v2437 = vmul.f32 %v2436, %v2414
  %v2438 = vmul.f32 %v2437, %v2436
  %v2439 = vmul.f32 0.5, %v2438
  %v2440 = vsub.f32 1.5, %v2439
  %v2441 = vmul.f32 %v2436, %v2440
  %vm2442 = vweird.f32 %v2414
  %vm2443 = vweird.f32 %v2436
  %vm2444 = vmor %vm2442, %vm2443
  %v2445 = vsel %vm2444, %v2436, %v2441
  %v2446 = vrsqrt.pop %v2415
  %v2447 = vmul.f32 %v2446, %v2415
  %v2448 = vmul.f32 %v2447, %v2446
  %v2449 = vmul.f32 0.5, %v2448
  %v2450 = vsub.f32 1.5, %v2449
  %v2451 = vmul.f32 %v2446, %v2450
  %vm2452 = vweird.f32 %v2415
  %vm2453 = vweird.f32 %v2446
  %vm2454 = vmor %vm2452, %vm2453
  %v2455 = vsel %vm2454, %v2446, %v2451
  %v2456 = vmul.f32 %v669, %v2425
  %v2457 = vmul.f32 %v672, %v2435
  %v2458 = vmul.f32 %v675, %v2445
  %v2459 = vmul.f32 %v678, %v2455
  %v2460 = vmul.f32 %v2384, %v2456
  %v2461 = vmul.f32 %v2385, %v2457
  %v2462 = vmul.f32 %v2386, %v2458
  %v2463 = vmul.f32 %v2387, %v2459
  %v2464 = vsub.f32 %v681, %v2460
  %v2465 = vsub.f32 %v684, %v2461
  %v2466 = vsub.f32 %v687, %v2462
  %v2467 = vsub.f32 %v690, %v2463
  %v2468 = vmul.f32 %v2372, %v2456
  %v2469 = vmul.f32 %v2373, %v2457
  %v2470 = vmul.f32 %v2374, %v2458
  %v2471 = vmul.f32 %v2375, %v2459
  %v2472 = vadd.f32 %v2468, %v2464
  %v2473 = vadd.f32 %v2469, %v2465
  %v2474 = vadd.f32 %v2470, %v2466
  %v2475 = vadd.f32 %v2471, %v2467
  %v2476 = vmax.f32 %v2472, 0.0
  %v2477 = vmax.f32 %v2473, 0.0
  %v2478 = vmax.f32 %v2474, 0.0
  %v2479 = vmax.f32 %v2475, 0.0
  %2480 = vset.pattern.permute.xlu0 10
  %2481 = vperm.xlu0 %2480, %v17
  %v2482 = vpop.permute.xlu0 %2481
  %2484 = vset.pattern.permute.xlu0 10
  %2485 = vperm.xlu0 %2484, %v18
  %v2486 = vpop.permute.xlu0 %2485
  %2488 = vset.pattern.permute.xlu0 10
  %2489 = vperm.xlu0 %2488, %v19
  %v2490 = vpop.permute.xlu0 %2489
  %2492 = vset.pattern.permute.xlu0 10
  %2493 = vperm.xlu0 %2492, %v20
  %v2494 = vpop.permute.xlu0 %2493
  %v2496 = vmul.f32 %v2476, %v2482
  %v2497 = vmul.f32 %v2477, %v2486
  %v2498 = vmul.f32 %v2478, %v2490
  %v2499 = vmul.f32 %v2479, %v2494
  %v2500 = vadd.f32 %v2496, %v2497
  %v2501 = vadd.f32 %v2500, %v2498
  %v2502 = vadd.f32 %v2501, %v2499
  %v2503 = vrot.slane %v2502, 4
  %v2504 = vadd.f32 %v2502, %v2503
  %v2505 = vrot.slane %v2504, 2
  %v2506 = vadd.f32 %v2504, %v2505
  %v2507 = vrot.slane %v2506, 1
  %v2508 = vadd.f32 %v2506, %v2507
  %2509 = vset.pattern.permute.xlu0 11
  %2510 = vperm.xlu0 %2509, %v17
  %v2511 = vpop.permute.xlu0 %2510
  %v2513 = vadd.f32 %v2508, %v2511
  %2514 = vst [vmem:[%s4] sm:$0x1] %v2513
  // Predicated region
  $region18: #{decoder_cbatchnorm.1} parent=0 // pred_check
    _
  $region19: #{decoder_cbatchnorm.1} parent=0 // pred_check_branch
    %2516 = sbr.rel (0) target = $region21
  $region20: #{decoder_cbatchnorm.1} parent=0 // pred_region
    _
  $region21: #{decoder_cbatchnorm.1} parent=0 // pred_fallthru
    _
  // Predicated region
  $region22: #{decoder_cbatchnorm.1} parent=0 // pred_check
    _
  $region23: #{decoder_cbatchnorm.1} parent=0 // pred_check_branch
    %2518 = sbr.rel (0) target = $region25
  $region24: #{decoder_cbatchnorm.1} parent=0 // pred_region
    _
  $region25: #{decoder_cbatchnorm.1} parent=0 // pred_fallthru
    _

</llo_original>
